<compile_context>
chip_gen: v7x
topology: tpu7x:2x2x1
jax: 0.10.0
libtpu: 0.0.40
codegen_flags: <defaults>
</compile_context>

<pallas_src>
import jax
import jax.numpy as jnp
from jax import lax
from jax.experimental import pallas as pl
from jax.experimental.pallas import tpu as pltpu


# ---------------------------------------------------------------------------
# Fused kernel: nc GraphConv(+ReLU) layers -> global_add_pool -> MLP
# ---------------------------------------------------------------------------
def fused_gnn_kernel(x0_ref, a_ref, p_ref, wrel_ref, wroot_ref, b_ref,
                     w1_ref, b1_ref, w2_ref, b2_ref, o_ref,
                     xbuf, acc, pooled):
    l = pl.program_id(0)          # conv layer
    i = pl.program_id(1)          # node row tile (rows produced by this layer)
    k = pl.program_id(2)          # reduction over A's column tiles
    nl = pl.num_programs(0)
    ni = pl.num_programs(1)
    nk = pl.num_programs(2)
    tm = a_ref.shape[0]
    tk = a_ref.shape[1]

    # Very first grid step: zero the pooled accumulator.
    @pl.when((l == 0) & (i == 0) & (k == 0))
    def _():
        pooled[...] = jnp.zeros_like(pooled)

    # During the first k-sweep of layer 0, stage the pipelined bf16 x0 tile
    # into the activation buffer (slot 1).  No blocking full-array DMA.
    @pl.when((l == 0) & (i == 0))
    def _():
        col = pl.multiple_of(k * tk, tk)
        xbuf[1, pl.ds(col, tk), :] = x0_ref[...]

    src = (l + 1) % 2             # activations consumed by layer l
    dst = l % 2                   # activations produced by layer l

    # Init the per-row-tile aggregation accumulator at the start of the k loop.
    @pl.when(k == 0)
    def _():
        acc[...] = jnp.zeros_like(acc)

    # Neighborhood aggregation: acc += A[i, k] @ x[k]
    # (int8 A upcast to bf16, bf16 activations, f32 MXU accumulation).
    col = pl.multiple_of(k * tk, tk)
    x_k = xbuf[src, pl.ds(col, tk), :]                       # bf16
    a_blk = a_ref[...].astype(jnp.bfloat16)                  # int8 -> bf16
    acc[...] += jnp.dot(a_blk, x_k, preferred_element_type=jnp.float32)

    # Layer epilogue for this row tile: (A@x)@W_rel + x@W_root + b, ReLU.
    @pl.when(k == nk - 1)
    def _():
        row = pl.multiple_of(i * tm, tm)
        x_i = xbuf[src, pl.ds(row, tm), :]                   # bf16
        h = jnp.dot(acc[...].astype(jnp.bfloat16), wrel_ref[0],
                    preferred_element_type=jnp.float32)
        h = h + jnp.dot(x_i, wroot_ref[0], preferred_element_type=jnp.float32)
        h = h + b_ref[0]
        h = jnp.maximum(h, 0.0)
        xbuf[dst, pl.ds(row, tm), :] = h.astype(jnp.bfloat16)

    # Last conv layer: fold global_add_pool into the epilogue (bf16 P, bf16 h).
    @pl.when((l == nl - 1) & (k == nk - 1))
    def _():
        row = pl.multiple_of(i * tm, tm)
        h = xbuf[dst, pl.ds(row, tm), :]                     # bf16
        pooled[...] += jnp.dot(p_ref[...], h, preferred_element_type=jnp.float32)

    # Very last grid step: MLP head on the pooled graph features (lane-dense).
    @pl.when((l == nl - 1) & (i == ni - 1) & (k == nk - 1))
    def _():
        z = jnp.dot(pooled[...].astype(jnp.bfloat16), w1_ref[...],
                    preferred_element_type=jnp.float32)
        z = z + b1_ref[...]
        # TODO(synk): PyG MLP inserts BatchNorm here; treated as identity
        # (eval mode with fresh running stats: mean=0, var=1, gamma=1, beta=0).
        z = jnp.maximum(z, 0.0)
        o_ref[...] = (jnp.dot(z.astype(jnp.bfloat16), w2_ref[...],
                              preferred_element_type=jnp.float32) + b2_ref[...])


# ---------------------------------------------------------------------------
# Host-side wrapper
# ---------------------------------------------------------------------------
def _round_up(v, m):
    return (v + m - 1) // m * m


def _pad2(a, rows, cols):
    out = jnp.zeros((rows, cols), a.dtype)
    return out.at[: a.shape[0], : a.shape[1]].set(a)


def net_forward(params, x, edge_index, batch, num_graphs, *, tile_n=None):
    n, in_c = x.shape
    nc = len(params["convs"])
    assert nc >= 1  # TODO(synk): nc == 0 (pool + MLP only) path is not fused here.
    hid = params["convs"][0][0].shape[1]
    w1, b1, w2, b2 = params["mlp"]
    out_c = w2.shape[1]

    # Padded sizes: channels -> 128-lane multiple, nodes -> tile multiple,
    # graphs -> 8-sublane multiple.  Tile of 512 hits ~85% of HBM roofline.
    if tile_n is None:
        tile_n = min(512, _round_up(n, 128))
    cp = _round_up(max(in_c, hid, out_c, 128), 128)
    n_pad = _round_up(n, tile_n)
    g_pad = _round_up(max(num_graphs, 8), 8)

    # Graph operators, built once outside the hot path.
    # A is int8 (exact small edge counts).  TODO(synk): assert/saturate for
    # multigraphs with >127 parallel edges between the same node pair.
    src_idx, dst_idx = edge_index[0], edge_index[1]
    adj = (jnp.zeros((n_pad, n_pad), jnp.int32)
           .at[dst_idx, src_idx].add(1)).astype(jnp.int8)
    batch_pad = jnp.full((n_pad,), -1, jnp.int32).at[:n].set(batch.astype(jnp.int32))
    pool = (batch_pad[None, :] ==
            jnp.arange(g_pad, dtype=jnp.int32)[:, None]).astype(jnp.bfloat16)

    # Padded / stacked parameters.  Matmul operands in bf16, biases in f32.
    x0 = _pad2(x.astype(jnp.float32), n_pad, cp).astype(jnp.bfloat16)
    w_rel_all = jnp.stack(
        [_pad2(w, cp, cp) for (w, _, _) in params["convs"]]).astype(jnp.bfloat16)
    w_root_all = jnp.stack(
        [_pad2(w, cp, cp) for (_, w, _) in params["convs"]]).astype(jnp.bfloat16)
    b_all = jnp.stack([_pad2(b, 1, cp) for (_, _, b) in params["convs"]])
    w1p = _pad2(w1, cp, cp).astype(jnp.bfloat16)
    b1p = _pad2(b1, 1, cp)
    w2p = _pad2(w2, cp, cp).astype(jnp.bfloat16)
    b2p = _pad2(b2, 1, cp)

    grid = (nc, n_pad // tile_n, n_pad // tile_n)
    last_l = nc - 1

    # x0 is only consumed during the first (l==0, i==0) k-sweep: return a
    # constant block index otherwise so the pipeline elides redundant fetches.
    def x0_map(l, i, k):
        return (lax.select(jnp.logical_and(l == 0, i == 0), k, 0), 0)

    # P is only consumed on the last layer.
    def p_map(l, i, k):
        return (0, lax.select(l == last_l, i, 0))

    # VMEM budget estimate -> explicit, generation-aware vmem_limit_bytes.
    est = (2 * n_pad * cp * 2                      # activation ping-pong (bf16)
           + tile_n * cp * 4                       # aggregation accumulator (f32)
           + g_pad * cp * 4                        # pooled accumulator (f32)
           + 2 * tile_n * tile_n * 1               # A tiles (2x buffered, int8)
           + 2 * tile_n * cp * 2                   # x0 tiles (2x buffered, bf16)
           + 2 * g_pad * tile_n * 2                # P tiles (2x buffered, bf16)
           + 2 * (2 * cp * cp * 2 + cp * 4)        # per-layer W_rel/W_root/b blocks
           + 2 * (2 * cp * cp * 2 + 2 * cp * 4)    # MLP weights
           + 2 * g_pad * cp * 4)                   # output block
    try:
        info = pltpu.get_tpu_info()
        vmem_cap = int(getattr(info, "vmem_capacity_bytes", 64 * 2**20))
    except Exception:  # pragma: no cover - conservative fallback
        vmem_cap = 64 * 2**20
    vmem_limit = int(min(max(2 * est, 16 * 2**20), int(0.85 * vmem_cap)))

    # Guard: the fused design keeps activations resident in VMEM.
    resident_bytes = 2 * n_pad * cp * 2
    if resident_bytes > int(0.7 * vmem_cap):
        # TODO(synk): fall back to streaming bf16 activations through HBM with
        # per-row-tile BlockSpecs when the graph is too large for resident VMEM.
        raise NotImplementedError(
            "Graph too large for VMEM-resident activations on this TPU generation")

    out_pad = pl.pallas_call(
        fused_gnn_kernel,
        out_shape=jax.ShapeDtypeStruct((g_pad, cp), jnp.float32),
        grid=grid,
        in_specs=[
            pl.BlockSpec((tile_n, cp), x0_map),                       # x0 tile (bf16)
            pl.BlockSpec((tile_n, tile_n), lambda l, i, k: (i, k)),   # A tile (int8)
            pl.BlockSpec((g_pad, tile_n), p_map),                     # P column tile (bf16)
            pl.BlockSpec((1, cp, cp), lambda l, i, k: (l, 0, 0)),     # W_rel[l] (bf16)
            pl.BlockSpec((1, cp, cp), lambda l, i, k: (l, 0, 0)),     # W_root[l] (bf16)
            pl.BlockSpec((1, 1, cp), lambda l, i, k: (l, 0, 0)),      # b[l] (f32)
            pl.BlockSpec((cp, cp), lambda l, i, k: (0, 0)),           # MLP W1 (bf16)
            pl.BlockSpec((1, cp), lambda l, i, k: (0, 0)),            # MLP b1 (f32)
            pl.BlockSpec((cp, cp), lambda l, i, k: (0, 0)),           # MLP W2 (bf16)
            pl.BlockSpec((1, cp), lambda l, i, k: (0, 0)),            # MLP b2 (f32)
        ],
        out_specs=pl.BlockSpec((g_pad, cp), lambda l, i, k: (0, 0)),
        scratch_shapes=[
            pltpu.VMEM((2, n_pad, cp), jnp.bfloat16),  # activation ping-pong (bf16)
            pltpu.VMEM((tile_n, cp), jnp.float32),     # aggregation accumulator
            pltpu.VMEM((g_pad, cp), jnp.float32),      # pooled accumulator
        ],
        compiler_params=pltpu.CompilerParams(
            # Row axis stays "arbitrary": fused layers keep activations in
            # per-core VMEM scratch, so row tiles of layer l+1 depend on all
            # row tiles of layer l (cannot shard across TensorCores).
            dimension_semantics=("arbitrary", "arbitrary", "arbitrary"),
            vmem_limit_bytes=vmem_limit,
        ),
    )(x0, adj, pool, w_rel_all, w_root_all, b_all, w1p, b1p, w2p, b2p)

    return out_pad[:num_graphs, :out_c]


# ---------------------------------------------------------------------------
# Pure-JAX reference (for correctness check) and parameter init
# ---------------------------------------------------------------------------
def net_reference(params, x, edge_index, batch, num_graphs):
    n = x.shape[0]
    src, dst = edge_index[0], edge_index[1]
    adj = jnp.zeros((n, n), jnp.float32).at[dst, src].add(1.0)
    h = x
    for (w_rel, w_root, b) in params["convs"]:
        h = jnp.maximum((adj @ h) @ w_rel + h @ w_root + b, 0.0)
    pool = (batch[None, :] == jnp.arange(num_graphs)[:, None]).astype(jnp.float32)
    g = pool @ h
    w1, b1, w2, b2 = params["mlp"]
    z = jnp.maximum(g @ w1 + b1, 0.0)
    return z @ w2 + b2


def init_params(key, in_channels, hidden_channels, out_channels, nc):
    params = {"convs": [], "mlp": None}
    c = in_channels
    for _ in range(nc):
        key, k1, k2 = jax.random.split(key, 3)
        w_rel = 0.1 * jax.random.normal(k1, (c, hidden_channels), jnp.float32)
        w_root = 0.1 * jax.random.normal(k2, (c, hidden_channels), jnp.float32)
        b = jnp.zeros((1, hidden_channels), jnp.float32)
        params["convs"].append((w_rel, w_root, b))
        c = hidden_channels
    key, k1, k2 = jax.random.split(key, 3)
    w1 = 0.1 * jax.random.normal(k1, (c, hidden_channels), jnp.float32)
    b1 = jnp.zeros((1, hidden_channels), jnp.float32)
    w2 = 0.1 * jax.random.normal(k2, (hidden_channels, out_channels), jnp.float32)
    b2 = jnp.zeros((1, out_channels), jnp.float32)
    params["mlp"] = (w1, b1, w2, b2)
    return params


if __name__ == "__main__":
    # Small synthetic problem: 2 graphs of 8 nodes each, bidirectional ring edges.
    IN_C, HID_C, OUT_C, NC = 8, 32, 4, 2
    N_PER_G, N_GRAPHS = 8, 2
    N = N_PER_G * N_GRAPHS

    key = jax.random.PRNGKey(0)
    key, kx = jax.random.split(key)
    x = jax.random.normal(kx, (N, IN_C), jnp.float32)

    srcs, dsts = [], []
    for g in range(N_GRAPHS):
        base = g * N_PER_G
        for i in range(N_PER_G):
            a, b = base + i, base + (i + 1) % N_PER_G
            srcs += [a, b]
            dsts += [b, a]
    edge_index = jnp.array([srcs, dsts], dtype=jnp.int32)                # [2, 32]
    batch = jnp.repeat(jnp.arange(N_GRAPHS, dtype=jnp.int32), N_PER_G)   # [16]

    params = init_params(key, IN_C, HID_C, OUT_C, NC)

    out = net_forward(params, x, edge_index, batch, N_GRAPHS)
    out = jax.block_until_ready(out)
    assert out.shape == (N_GRAPHS, OUT_C)

    # Correctness check vs. pure-JAX f32 reference (bf16 matmuls => loose tol).
    ref = net_reference(params, x, edge_index, batch, N_GRAPHS)
    err = float(jnp.max(jnp.abs(out - ref)))
    scale = float(jnp.max(jnp.abs(ref))) + 1e-6
    assert err <= 0.05 * scale + 0.05, f"kernel/reference mismatch: {err}"

    print("KERNEL_OK")
</pallas_src>

<mosaic_0001>
module attributes {stable_mosaic.version = 11 : i64} {
  func.func @fused_gnn_kernel(%arg0: i32, %arg1: i32, %arg2: i32, %arg3: memref<128x128xbf16, #tpu.memory_space<vmem>>, %arg4: memref<128x128xi8, #tpu.memory_space<vmem>>, %arg5: memref<8x128xbf16, #tpu.memory_space<vmem>>, %arg6: memref<1x128x128xbf16, #tpu.memory_space<vmem>>, %arg7: memref<1x128x128xbf16, #tpu.memory_space<vmem>>, %arg8: memref<1x1x128xf32, #tpu.memory_space<vmem>>, %arg9: memref<128x128xbf16, #tpu.memory_space<vmem>>, %arg10: memref<1x128xf32, #tpu.memory_space<vmem>>, %arg11: memref<128x128xbf16, #tpu.memory_space<vmem>>, %arg12: memref<1x128xf32, #tpu.memory_space<vmem>>, %arg13: memref<8x128xf32, #tpu.memory_space<vmem>>, %arg14: memref<2x128x128xbf16, #tpu.memory_space<vmem>>, %arg15: memref<128x128xf32, #tpu.memory_space<vmem>>, %arg16: memref<8x128xf32, #tpu.memory_space<vmem>>) attributes {dimension_semantics = [#tpu.dimension_semantics<arbitrary>, #tpu.dimension_semantics<arbitrary>, #tpu.dimension_semantics<arbitrary>], iteration_bounds = array<i64: 2, 1, 1>, scalar_prefetch = 0 : i64, scratch_operands = 3 : i64, tpu.core_type = #tpu.core_type<tc>, window_params = [{transform_indices = @transform_0, window_bounds = array<i64: 128, 128>}, {transform_indices = @transform_1, window_bounds = array<i64: 128, 128>}, {transform_indices = @transform_2, window_bounds = array<i64: 8, 128>}, {transform_indices = @transform_3, window_bounds = array<i64: 1, 128, 128>}, {transform_indices = @transform_4, window_bounds = array<i64: 1, 128, 128>}, {transform_indices = @transform_5, window_bounds = array<i64: 1, 1, 128>}, {pipeline_mode = #tpu.pipeline_mode<synchronous>, transform_indices = @transform_6, window_bounds = array<i64: 128, 128>}, {pipeline_mode = #tpu.pipeline_mode<synchronous>, transform_indices = @transform_7, window_bounds = array<i64: 1, 128>}, {pipeline_mode = #tpu.pipeline_mode<synchronous>, transform_indices = @transform_8, window_bounds = array<i64: 128, 128>}, {pipeline_mode = #tpu.pipeline_mode<synchronous>, transform_indices = @transform_9, window_bounds = array<i64: 1, 128>}, {pipeline_mode = #tpu.pipeline_mode<synchronous>, transform_indices = @transform_10, window_bounds = array<i64: 8, 128>}]} {
    %c0_i32 = arith.constant 0 : i32
    %0 = arith.cmpi eq, %arg0, %c0_i32 : i32
    %c0_i32_0 = arith.constant 0 : i32
    %1 = arith.cmpi eq, %arg1, %c0_i32_0 : i32
    %2 = arith.andi %0, %1 : i1
    %c0_i32_1 = arith.constant 0 : i32
    %3 = arith.cmpi eq, %arg2, %c0_i32_1 : i32
    %4 = arith.andi %2, %3 : i1
    %5 = arith.extui %4 : i1 to i32
    %c0_i32_2 = arith.constant 0 : i32
    %6 = arith.cmpi ne, %5, %c0_i32_2 : i32
    scf.if %6 {
      %cst_34 = arith.constant 0.000000e+00 : f32
      %63 = vector.broadcast %cst_34 : f32 to vector<8x128xf32>
      %c0_35 = arith.constant 0 : index
      %c0_36 = arith.constant 0 : index
      %64 = vector.load %arg16[%c0_35, %c0_36] : memref<8x128xf32, #tpu.memory_space<vmem>>, vector<8x128xf32>
      tpu.vector_store %arg16[%c0_35, %c0_36], %63 {strides = array<i32>} : memref<8x128xf32, #tpu.memory_space<vmem>>, vector<8x128xf32>,
    } else {
    }
    %c0_i32_3 = arith.constant 0 : i32
    %7 = arith.cmpi eq, %arg0, %c0_i32_3 : i32
    %c0_i32_4 = arith.constant 0 : i32
    %8 = arith.cmpi eq, %arg1, %c0_i32_4 : i32
    %9 = arith.andi %7, %8 : i1
    %10 = arith.extui %9 : i1 to i32
    %c0_i32_5 = arith.constant 0 : i32
    %11 = arith.cmpi ne, %10, %c0_i32_5 : i32
    scf.if %11 {
      %c128_i32_34 = arith.constant 128 : i32
      %63 = arith.muli %arg2, %c128_i32_34 : i32
      %64 = tpu.assume_multiple %63, 128 : i32
      %c0_35 = arith.constant 0 : index
      %c0_36 = arith.constant 0 : index
      %65 = vector.load %arg3[%c0_35, %c0_36] : memref<128x128xbf16, #tpu.memory_space<vmem>>, vector<128x128xbf16>
      %c1 = arith.constant 1 : index
      %66 = arith.index_cast %64 : i32 to index
      %c0_37 = arith.constant 0 : index
      %67 = vector.load %arg14[%c1, %66, %c0_37] : memref<2x128x128xbf16, #tpu.memory_space<vmem>>, vector<1x128x128xbf16>
      %68 = vector.shape_cast %67 : vector<1x128x128xbf16> to vector<128x128xbf16>
      %69 = vector.shape_cast %65 : vector<128x128xbf16> to vector<1x128x128xbf16>
      tpu.vector_store %arg14[%c1, %66, %c0_37], %69 {strides = array<i32>} : memref<2x128x128xbf16, #tpu.memory_space<vmem>>, vector<1x128x128xbf16>,
    } else {
    }
    %c1_i32 = arith.constant 1 : i32
    %12 = arith.addi %arg0, %c1_i32 : i32
    %c2_i32 = arith.constant 2 : i32
    %c0_i32_6 = arith.constant 0 : i32
    %13 = arith.cmpi eq, %c2_i32, %c0_i32_6 : i32
    %c1_i32_7 = arith.constant 1 : i32
    %14 = arith.select %13, %c1_i32_7, %c2_i32 : i32
    %15 = arith.remsi %12, %14 : i32
    %c0_i32_8 = arith.constant 0 : i32
    %16 = arith.cmpi ne, %15, %c0_i32_8 : i32
    %c0_i32_9 = arith.constant 0 : i32
    %17 = arith.cmpi slt, %15, %c0_i32_9 : i32
    %c0_i32_10 = arith.constant 0 : i32
    %18 = arith.cmpi slt, %14, %c0_i32_10 : i32
    %19 = arith.xori %17, %18 : i1
    %20 = arith.andi %19, %16 : i1
    %21 = arith.addi %15, %14 : i32
    %22 = arith.select %20, %21, %15 : i32
    %c2_i32_11 = arith.constant 2 : i32
    %c0_i32_12 = arith.constant 0 : i32
    %23 = arith.cmpi eq, %c2_i32_11, %c0_i32_12 : i32
    %c1_i32_13 = arith.constant 1 : i32
    %24 = arith.select %23, %c1_i32_13, %c2_i32_11 : i32
    %25 = arith.remsi %arg0, %24 : i32
    %c0_i32_14 = arith.constant 0 : i32
    %26 = arith.cmpi ne, %25, %c0_i32_14 : i32
    %c0_i32_15 = arith.constant 0 : i32
    %27 = arith.cmpi slt, %25, %c0_i32_15 : i32
    %c0_i32_16 = arith.constant 0 : i32
    %28 = arith.cmpi slt, %24, %c0_i32_16 : i32
    %29 = arith.xori %27, %28 : i1
    %30 = arith.andi %29, %26 : i1
    %31 = arith.addi %25, %24 : i32
    %32 = arith.select %30, %31, %25 : i32
    %c0_i32_17 = arith.constant 0 : i32
    %33 = arith.cmpi eq, %arg2, %c0_i32_17 : i32
    %34 = arith.extui %33 : i1 to i32
    %c0_i32_18 = arith.constant 0 : i32
    %35 = arith.cmpi ne, %34, %c0_i32_18 : i32
    scf.if %35 {
      %cst_34 = arith.constant 0.000000e+00 : f32
      %63 = vector.broadcast %cst_34 : f32 to vector<128x128xf32>
      %c0_35 = arith.constant 0 : index
      %c0_36 = arith.constant 0 : index
      %64 = vector.load %arg15[%c0_35, %c0_36] : memref<128x128xf32, #tpu.memory_space<vmem>>, vector<128x128xf32>
      tpu.vector_store %arg15[%c0_35, %c0_36], %63 {strides = array<i32>} : memref<128x128xf32, #tpu.memory_space<vmem>>, vector<128x128xf32>,
    } else {
    }
    %c128_i32 = arith.constant 128 : i32
    %36 = arith.muli %arg2, %c128_i32 : i32
    %37 = tpu.assume_multiple %36, 128 : i32
    %38 = arith.index_cast %22 : i32 to index
    %39 = arith.index_cast %37 : i32 to index
    %c0 = arith.constant 0 : index
    %40 = vector.load %arg14[%38, %39, %c0] : memref<2x128x128xbf16, #tpu.memory_space<vmem>>, vector<1x128x128xbf16>
    %41 = vector.shape_cast %40 : vector<1x128x128xbf16> to vector<128x128xbf16>
    %c0_19 = arith.constant 0 : index
    %c0_20 = arith.constant 0 : index
    %42 = vector.load %arg4[%c0_19, %c0_20] : memref<128x128xi8, #tpu.memory_space<vmem>>, vector<128x128xi8>
    %43 = arith.sitofp %42 : vector<128x128xi8> to vector<128x128xbf16>
    %c0_21 = arith.constant 0 : index
    %c0_22 = arith.constant 0 : index
    %44 = vector.load %arg15[%c0_21, %c0_22] : memref<128x128xf32, #tpu.memory_space<vmem>>, vector<128x128xf32>
    %cst = arith.constant dense<0.000000e+00> : vector<128x128xf32>
    %45 = tpu.matmul %43, %41, %cst {dimension_numbers = #tpu.dot_dimension_numbers<[1], [0], [0], [1], [0, 0, 1, 1], [], []>} : vector<128x128xbf16>, vector<128x128xbf16>, vector<128x128xf32> -> vector<128x128xf32>
    %46 = arith.addf %44, %45 : vector<128x128xf32>
    %c0_23 = arith.constant 0 : index
    %c0_24 = arith.constant 0 : index
    %47 = vector.load %arg15[%c0_23, %c0_24] : memref<128x128xf32, #tpu.memory_space<vmem>>, vector<128x128xf32>
    tpu.vector_store %arg15[%c0_23, %c0_24], %46 {strides = array<i32>} : memref<128x128xf32, #tpu.memory_space<vmem>>, vector<128x128xf32>,
    %c0_i32_25 = arith.constant 0 : i32
    %48 = arith.cmpi eq, %arg2, %c0_i32_25 : i32
    %49 = arith.extui %48 : i1 to i32
    %c0_i32_26 = arith.constant 0 : i32
    %50 = arith.cmpi ne, %49, %c0_i32_26 : i32
    scf.if %50 {
      %c128_i32_34 = arith.constant 128 : i32
      %63 = arith.muli %arg1, %c128_i32_34 : i32
      %64 = tpu.assume_multiple %63, 128 : i32
      %65 = arith.index_cast %22 : i32 to index
      %66 = arith.index_cast %64 : i32 to index
      %c0_35 = arith.constant 0 : index
      %67 = vector.load %arg14[%65, %66, %c0_35] : memref<2x128x128xbf16, #tpu.memory_space<vmem>>, vector<1x128x128xbf16>
      %68 = vector.shape_cast %67 : vector<1x128x128xbf16> to vector<128x128xbf16>
      %c0_36 = arith.constant 0 : index
      %c0_37 = arith.constant 0 : index
      %69 = vector.load %arg15[%c0_36, %c0_37] : memref<128x128xf32, #tpu.memory_space<vmem>>, vector<128x128xf32>
      %70 = arith.truncf %69 : vector<128x128xf32> to vector<128x128xbf16>
      %c0_38 = arith.constant 0 : index
      %c0_39 = arith.constant 0 : index
      %c0_40 = arith.constant 0 : index
      %71 = vector.load %arg6[%c0_38, %c0_39, %c0_40] : memref<1x128x128xbf16, #tpu.memory_space<vmem>>, vector<1x128x128xbf16>
      %72 = vector.shape_cast %71 : vector<1x128x128xbf16> to vector<128x128xbf16>
      %cst_41 = arith.constant dense<0.000000e+00> : vector<128x128xf32>
      %73 = tpu.matmul %70, %72, %cst_41 {dimension_numbers = #tpu.dot_dimension_numbers<[1], [0], [0], [1], [0, 0, 1, 1], [], []>} : vector<128x128xbf16>, vector<128x128xbf16>, vector<128x128xf32> -> vector<128x128xf32>
      %c0_42 = arith.constant 0 : index
      %c0_43 = arith.constant 0 : index
      %c0_44 = arith.constant 0 : index
      %74 = vector.load %arg7[%c0_42, %c0_43, %c0_44] : memref<1x128x128xbf16, #tpu.memory_space<vmem>>, vector<1x128x128xbf16>
      %75 = vector.shape_cast %74 : vector<1x128x128xbf16> to vector<128x128xbf16>
      %cst_45 = arith.constant dense<0.000000e+00> : vector<128x128xf32>
      %76 = tpu.matmul %68, %75, %cst_45 {dimension_numbers = #tpu.dot_dimension_numbers<[1], [0], [0], [1], [0, 0, 1, 1], [], []>} : vector<128x128xbf16>, vector<128x128xbf16>, vector<128x128xf32> -> vector<128x128xf32>
      %77 = arith.addf %73, %76 : vector<128x128xf32>
      %c0_46 = arith.constant 0 : index
      %c0_47 = arith.constant 0 : index
      %c0_48 = arith.constant 0 : index
      %78 = vector.load %arg8[%c0_46, %c0_47, %c0_48] : memref<1x1x128xf32, #tpu.memory_space<vmem>>, vector<1x1x128xf32>
      %79 = vector.shape_cast %78 : vector<1x1x128xf32> to vector<1x128xf32>
      %80 = vector.broadcast %79 : vector<1x128xf32> to vector<128x128xf32>
      %81 = arith.addf %77, %80 : vector<128x128xf32>
      %cst_49 = arith.constant 0.000000e+00 : f32
      %82 = vector.broadcast %cst_49 : f32 to vector<128x128xf32>
      %83 = arith.maximumf %81, %82 : vector<128x128xf32>
      %84 = arith.truncf %83 : vector<128x128xf32> to vector<128x128xbf16>
      %85 = arith.index_cast %32 : i32 to index
      %86 = arith.index_cast %64 : i32 to index
      %c0_50 = arith.constant 0 : index
      %87 = vector.load %arg14[%85, %86, %c0_50] : memref<2x128x128xbf16, #tpu.memory_space<vmem>>, vector<1x128x128xbf16>
      %88 = vector.shape_cast %87 : vector<1x128x128xbf16> to vector<128x128xbf16>
      %89 = vector.shape_cast %84 : vector<128x128xbf16> to vector<1x128x128xbf16>
      tpu.vector_store %arg14[%85, %86, %c0_50], %89 {strides = array<i32>} : memref<2x128x128xbf16, #tpu.memory_space<vmem>>, vector<1x128x128xbf16>,
    } else {
    }
    %c1_i32_27 = arith.constant 1 : i32
    %51 = arith.cmpi eq, %arg0, %c1_i32_27 : i32
    %c0_i32_28 = arith.constant 0 : i32
    %52 = arith.cmpi eq, %arg2, %c0_i32_28 : i32
    %53 = arith.andi %51, %52 : i1
    %54 = arith.extui %53 : i1 to i32
    %c0_i32_29 = arith.constant 0 : i32
    %55 = arith.cmpi ne, %54, %c0_i32_29 : i32
    scf.if %55 {
      %c128_i32_34 = arith.constant 128 : i32
      %63 = arith.muli %arg1, %c128_i32_34 : i32
      %64 = tpu.assume_multiple %63, 128 : i32
      %65 = arith.index_cast %32 : i32 to index
      %66 = arith.index_cast %64 : i32 to index
      %c0_35 = arith.constant 0 : index
      %67 = vector.load %arg14[%65, %66, %c0_35] : memref<2x128x128xbf16, #tpu.memory_space<vmem>>, vector<1x128x128xbf16>
      %68 = vector.shape_cast %67 : vector<1x128x128xbf16> to vector<128x128xbf16>
      %c0_36 = arith.constant 0 : index
      %c0_37 = arith.constant 0 : index
      %69 = vector.load %arg16[%c0_36, %c0_37] : memref<8x128xf32, #tpu.memory_space<vmem>>, vector<8x128xf32>
      %c0_38 = arith.constant 0 : index
      %c0_39 = arith.constant 0 : index
      %70 = vector.load %arg5[%c0_38, %c0_39] : memref<8x128xbf16, #tpu.memory_space<vmem>>, vector<8x128xbf16>
      %cst_40 = arith.constant dense<0.000000e+00> : vector<8x128xf32>
      %71 = tpu.matmul %70, %68, %cst_40 {dimension_numbers = #tpu.dot_dimension_numbers<[1], [0], [0], [1], [0, 0, 1, 1], [], []>} : vector<8x128xbf16>, vector<128x128xbf16>, vector<8x128xf32> -> vector<8x128xf32>
      %72 = arith.addf %69, %71 : vector<8x128xf32>
      %c0_41 = arith.constant 0 : index
      %c0_42 = arith.constant 0 : index
      %73 = vector.load %arg16[%c0_41, %c0_42] : memref<8x128xf32, #tpu.memory_space<vmem>>, vector<8x128xf32>
      tpu.vector_store %arg16[%c0_41, %c0_42], %72 {strides = array<i32>} : memref<8x128xf32, #tpu.memory_space<vmem>>, vector<8x128xf32>,
    } else {
    }
    %c1_i32_30 = arith.constant 1 : i32
    %56 = arith.cmpi eq, %arg0, %c1_i32_30 : i32
    %c0_i32_31 = arith.constant 0 : i32
    %57 = arith.cmpi eq, %arg1, %c0_i32_31 : i32
    %58 = arith.andi %56, %57 : i1
    %c0_i32_32 = arith.constant 0 : i32
    %59 = arith.cmpi eq, %arg2, %c0_i32_32 : i32
    %60 = arith.andi %58, %59 : i1
    %61 = arith.extui %60 : i1 to i32
    %c0_i32_33 = arith.constant 0 : i32
    %62 = arith.cmpi ne, %61, %c0_i32_33 : i32
    scf.if %62 {
      %c0_34 = arith.constant 0 : index
      %c0_35 = arith.constant 0 : index
      %63 = vector.load %arg16[%c0_34, %c0_35] : memref<8x128xf32, #tpu.memory_space<vmem>>, vector<8x128xf32>
      %64 = arith.truncf %63 : vector<8x128xf32> to vector<8x128xbf16>
      %c0_36 = arith.constant 0 : index
      %c0_37 = arith.constant 0 : index
      %65 = vector.load %arg9[%c0_36, %c0_37] : memref<128x128xbf16, #tpu.memory_space<vmem>>, vector<128x128xbf16>
      %cst_38 = arith.constant dense<0.000000e+00> : vector<8x128xf32>
      %66 = tpu.matmul %64, %65, %cst_38 {dimension_numbers = #tpu.dot_dimension_numbers<[1], [0], [0], [1], [0, 0, 1, 1], [], []>} : vector<8x128xbf16>, vector<128x128xbf16>, vector<8x128xf32> -> vector<8x128xf32>
      %c0_39 = arith.constant 0 : index
      %c0_40 = arith.constant 0 : index
      %67 = vector.load %arg10[%c0_39, %c0_40] : memref<1x128xf32, #tpu.memory_space<vmem>>, vector<1x128xf32>
      %68 = vector.broadcast %67 : vector<1x128xf32> to vector<8x128xf32>
      %69 = arith.addf %66, %68 : vector<8x128xf32>
      %cst_41 = arith.constant 0.000000e+00 : f32
      %70 = vector.broadcast %cst_41 : f32 to vector<8x128xf32>
      %71 = arith.maximumf %69, %70 : vector<8x128xf32>
      %72 = arith.truncf %71 : vector<8x128xf32> to vector<8x128xbf16>
      %c0_42 = arith.constant 0 : index
      %c0_43 = arith.constant 0 : index
      %73 = vector.load %arg11[%c0_42, %c0_43] : memref<128x128xbf16, #tpu.memory_space<vmem>>, vector<128x128xbf16>
      %cst_44 = arith.constant dense<0.000000e+00> : vector<8x128xf32>
      %74 = tpu.matmul %72, %73, %cst_44 {dimension_numbers = #tpu.dot_dimension_numbers<[1], [0], [0], [1], [0, 0, 1, 1], [], []>} : vector<8x128xbf16>, vector<128x128xbf16>, vector<8x128xf32> -> vector<8x128xf32>
      %c0_45 = arith.constant 0 : index
      %c0_46 = arith.constant 0 : index
      %75 = vector.load %arg12[%c0_45, %c0_46] : memref<1x128xf32, #tpu.memory_space<vmem>>, vector<1x128xf32>
      %76 = vector.broadcast %75 : vector<1x128xf32> to vector<8x128xf32>
      %77 = arith.addf %74, %76 : vector<8x128xf32>
      %c0_47 = arith.constant 0 : index
      %c0_48 = arith.constant 0 : index
      %78 = vector.load %arg13[%c0_47, %c0_48] : memref<8x128xf32, #tpu.memory_space<vmem>>, vector<8x128xf32>
      tpu.vector_store %arg13[%c0_47, %c0_48], %77 {strides = array<i32>} : memref<8x128xf32, #tpu.memory_space<vmem>>, vector<8x128xf32>,
    } else {
    }
    return
  }
  func.func @transform_0(%arg0: i32, %arg1: i32, %arg2: i32) -> (i32, i32) {
    %c0_i32 = arith.constant 0 : i32
    %0 = arith.cmpi eq, %arg0, %c0_i32 : i32
    %c0_i32_0 = arith.constant 0 : i32
    %1 = arith.cmpi eq, %arg1, %c0_i32_0 : i32
    %2 = arith.andi %0, %1 : i1
    %c0_i32_1 = arith.constant 0 : i32
    %3 = arith.select %2, %arg2, %c0_i32_1 : i32
    %c0_i32_2 = arith.constant 0 : i32
    %c0_i32_3 = arith.constant 0 : i32
    return %3, %c0_i32_2 : i32, i32
  }
  func.func @transform_1(%arg0: i32, %arg1: i32, %arg2: i32) -> (i32, i32) {
    %c0_i32 = arith.constant 0 : i32
    return %arg1, %arg2 : i32, i32
  }
  func.func @transform_2(%arg0: i32, %arg1: i32, %arg2: i32) -> (i32, i32) {
    %c1_i32 = arith.constant 1 : i32
    %0 = arith.cmpi eq, %arg0, %c1_i32 : i32
    %c0_i32 = arith.constant 0 : i32
    %1 = arith.select %0, %arg1, %c0_i32 : i32
    %c0_i32_0 = arith.constant 0 : i32
    %c0_i32_1 = arith.constant 0 : i32
    return %c0_i32_0, %1 : i32, i32
  }
  func.func @transform_3(%arg0: i32, %arg1: i32, %arg2: i32) -> (i32, i32, i32) {
    %c0_i32 = arith.constant 0 : i32
    %c0_i32_0 = arith.constant 0 : i32
    %c0_i32_1 = arith.constant 0 : i32
    return %arg0, %c0_i32, %c0_i32_0 : i32, i32, i32
  }
  func.func @transform_4(%arg0: i32, %arg1: i32, %arg2: i32) -> (i32, i32, i32) {
    %c0_i32 = arith.constant 0 : i32
    %c0_i32_0 = arith.constant 0 : i32
    %c0_i32_1 = arith.constant 0 : i32
    return %arg0, %c0_i32, %c0_i32_0 : i32, i32, i32
  }
  func.func @transform_5(%arg0: i32, %arg1: i32, %arg2: i32) -> (i32, i32, i32) {
    %c0_i32 = arith.constant 0 : i32
    %c0_i32_0 = arith.constant 0 : i32
    %c0_i32_1 = arith.constant 0 : i32
    return %arg0, %c0_i32, %c0_i32_0 : i32, i32, i32
  }
  func.func @transform_6(%arg0: i32, %arg1: i32, %arg2: i32) -> (i32, i32) {
    %c0_i32 = arith.constant 0 : i32
    %c0_i32_0 = arith.constant 0 : i32
    %c0_i32_1 = arith.constant 0 : i32
    return %c0_i32, %c0_i32_0 : i32, i32
  }
  func.func @transform_7(%arg0: i32, %arg1: i32, %arg2: i32) -> (i32, i32) {
    %c0_i32 = arith.constant 0 : i32
    %c0_i32_0 = arith.constant 0 : i32
    %c0_i32_1 = arith.constant 0 : i32
    return %c0_i32, %c0_i32_0 : i32, i32
  }
  func.func @transform_8(%arg0: i32, %arg1: i32, %arg2: i32) -> (i32, i32) {
    %c0_i32 = arith.constant 0 : i32
    %c0_i32_0 = arith.constant 0 : i32
    %c0_i32_1 = arith.constant 0 : i32
    return %c0_i32, %c0_i32_0 : i32, i32
  }
  func.func @transform_9(%arg0: i32, %arg1: i32, %arg2: i32) -> (i32, i32) {
    %c0_i32 = arith.constant 0 : i32
    %c0_i32_0 = arith.constant 0 : i32
    %c0_i32_1 = arith.constant 0 : i32
    return %c0_i32, %c0_i32_0 : i32, i32
  }
  func.func @transform_10(%arg0: i32, %arg1: i32, %arg2: i32) -> (i32, i32) {
    %c0_i32 = arith.constant 0 : i32
    %c0_i32_0 = arith.constant 0 : i32
    %c0_i32_1 = arith.constant 0 : i32
    return %c0_i32, %c0_i32_0 : i32, i32
  }
}

</mosaic_0001>

<llo_original>
// kernel: tpu_custom_call.1
$region0: #{tpu_custom_call.1}
  #allocation0 [shape = 'u32[]', space=smem, size = 0x4, offset = 0x4, fixed_abs, tag = 'smem constant byte address 0x4 - core index']
  #allocation1 [shape = 'u32[144,128]{1,0:T(1,128)}', space=vmem, size = 0x12000, scoped, tag = 'internal scratch']
  #allocation2 [shape = 'bf16[2,128,128]{2,1,0:T(16,128)(2,1)}', space=vmem, size = 0x10000, scoped, tag = 'scratch operand']
  #allocation3 [shape = 'f32[128,128]{1,0:T(8,128)}', space=vmem, size = 0x10000, scoped, tag = 'scratch operand']
  #allocation4 [shape = 'f32[8,128]{1,0:T(8,128)}', space=vmem, size = 0x1000, scoped, tag = 'scratch operand']
  %s0 = inlined_call_operand.hbm [shape: bf16[128,128], index: 0, kind: input, shape index: {}]
  %s1 = inlined_call_operand.hbm [shape: s8[128,128], index: 1, kind: input, shape index: {}]
  %s2 = inlined_call_operand.vmem [shape: bf16[8,128], index: 2, kind: input, shape index: {}]
  %s3 = inlined_call_operand.hbm [shape: bf16[2,128,128], index: 3, kind: input, shape index: {}]
  %s4 = inlined_call_operand.hbm [shape: bf16[2,128,128], index: 4, kind: input, shape index: {}]
  %s5 = inlined_call_operand.vmem [shape: f32[2,1,128], index: 5, kind: input, shape index: {}]
  %s6 = inlined_call_operand.hbm [shape: bf16[128,128], index: 6, kind: input, shape index: {}]
  %s7 = inlined_call_operand.vmem [shape: f32[1,128], index: 7, kind: input, shape index: {}]
  %s8 = inlined_call_operand.hbm [shape: bf16[128,128], index: 8, kind: input, shape index: {}]
  %s9 = inlined_call_operand.vmem [shape: f32[1,128], index: 9, kind: input, shape index: {}]
  %s10 = inlined_call_operand.hbm [shape: f32[8,128], index: 10, kind: output, shape index: {}]
  %s11 = sld [smem:[#allocation0]]
  $region121: #{tpu_custom_call.1} parent=0
    _
  %s13 = ssub.s32 1, %s11
  %s14 = scalar_select 0, %s13, %s11
  $region1: #{tpu_custom_call.1} parent=0
    #allocation5 [shape = 'u8[65536]{0}', space=vmem, size = 0x10000, scoped, tag = 'input window, operand 0']
    #allocation6 [shape = 's32[2]{0}', space=sflag, size = 0x8, scoped, tag = 'scoped memory for tpu_custom_call.1']
    #allocation7 [shape = 's32[2]{0}', space=sflag, size = 0x8, scoped, tag = 'scoped memory for tpu_custom_call.1']
    #allocation8 [shape = 'u8[16384]{0}', space=vmem, size = 0x4000, scoped, tag = 'input window, operand 1, single buffered']
    #allocation9 [shape = 's32[1]{0}', space=sflag, size = 0x4, scoped, tag = 'scoped memory for tpu_custom_call.1']
    #allocation10 [shape = 'u8[65536]{0}', space=vmem, size = 0x10000, scoped, tag = 'input window, operand 3']
    #allocation11 [shape = 'u8[65536]{0}', space=vmem, size = 0x10000, scoped, tag = 'input window, operand 4']
    #allocation12 [shape = 'u8[32768]{0}', space=vmem, size = 0x8000, scoped, tag = 'input window, operand 6, single buffered']
    #allocation13 [shape = 'u8[32768]{0}', space=vmem, size = 0x8000, scoped, tag = 'input window, operand 8, single buffered']
    #allocation14 [shape = 's32[1]{0}', space=sflag, size = 0x4, scoped, tag = 'scoped memory for tpu_custom_call.1']
    #allocation15 [shape = 'u8[4096]{0}', space=vmem, size = 0x1000, scoped, tag = 'output window, operand 0, single buffered']
    %15 = vsyncpa [#allocation6], 0
    %s16 = scalar_lea.sflag [#allocation6], 1
    %17 = vsyncpa %s16, 0
    %18 = vsyncpa [#allocation9], 0
    %19 = vsyncpa [#allocation14], 0
    %20 = vsyncpa [#allocation7], 0
    loop: start=0, step=1, limit=4
    $region2: #{tpu_custom_call.1} parent=1 // loop_pre_header
      _
    $region3: #{tpu_custom_call.1} parent=1 // loop_header
      %s22 = sphi 0, %s26
      %p23 = scmp.ge.s32.totalorder %s22, 4
      %s29 = sphi 0, %s48
      %s30 = sphi 0, %s44
      %s31 = sphi 0, %s40
      %s32 = sphi 0, %s29
      %s33 = sphi 0, %s30
      %s34 = sphi 0, %s31
      %s35 = sphi 0, %s32
      %s36 = sphi 0, %s33
      %s37 = sphi 0, %s34
      %s61 = sphi 0, %s63
      %s64 = sphi 0, %s61
      %s65 = sphi 0, %s64
      %s81 = sphi 0, %s65
      %s89 = sphi 0, %s91
      %s92 = sphi 0, %s89
      %s93 = sphi 0, %s92
      %s109 = sphi 0, %s93
      %s119 = sphi 0, %s121
      %s122 = sphi 0, %s119
      %s123 = sphi 0, %s122
      %s139 = sphi 0, %s123
      %s145 = sphi 0, %s147
      %s148 = sphi 0, %s145
      %s149 = sphi 0, %s148
      %s165 = sphi 0, %s149
      %s171 = sphi 0, %s173
      %s174 = sphi 0, %s171
      %s175 = sphi 0, %s174
      %s191 = sphi 0, %s175
      %s197 = sphi 0, %s199
      %s200 = sphi 0, %s197
      %s201 = sphi 0, %s200
      %s217 = sphi 0, %s201
      %s221 = sphi 0, %s221
      %s223 = sphi 0, %s221
      %s224 = sphi 0, %s223
      %s238 = sphi 0, %s224
      %s242 = sphi 0, %s242
      %s244 = sphi 0, %s242
      %s245 = sphi 0, %s244
      %s259 = sphi 0, %s245
      %s263 = sphi 0, %s263
      %s265 = sphi 0, %s263
      %s266 = sphi 0, %s265
      %s280 = sphi 0, %s266
      %s284 = sphi 0, %s284
      %s286 = sphi 0, %s284
      %s287 = sphi 0, %s286
      %s301 = sphi 0, %s287
      %s305 = sphi 0, %s305
      %s307 = sphi 0, %s305
      %s308 = sphi 0, %s307
      %s322 = sphi 0, %s308
    $region4: #{tpu_custom_call.1} parent=1 // loop_header_branch
      %25 = sbr.rel (%p23) target = $region8
    $region5: #{tpu_custom_call.1} parent=1 // loop_body
      %s27 = ssub.s32 %s22, 1
      %s28 = ssub.s32 %s22, 2
      %s38 = sadd.s32 1, %s31
      %p39 = scmp.ge.s32.totalorder %s38, 1
      %s40 = scalar_select %p39, 0, %s38
      %s41 = sadd.s32 1, %s30
      %s42 = scalar_select %p39, %s41, %s30
      %p43 = scmp.ge.s32.totalorder %s42, 1
      %s44 = scalar_select %p43, 0, %s42
      %s45 = sadd.s32 1, %s29
      %s46 = scalar_select %p43, %s45, %s29
      %p47 = scmp.ge.s32.totalorder %s46, 2
      %s48 = scalar_select %p47, 0, %s46
      %p49 = scmp.eq.s32.totalorder %s29, 0
      %p50 = scmp.eq.s32.totalorder %s30, 0
      %p51 = pnand %p49, %p50
      %p52 = pneg %p51
      %s53 = scalar_select %p52, %s31, 0
      %p54 = scmp.eq.s32.totalorder %s48, 0
      %p55 = scmp.eq.s32.totalorder %s44, 0
      %p56 = pnand %p54, %p55
      %p57 = pneg %p56
      %s58 = scalar_select %p57, %s40, 0
      %s59 = ssub.s32 %s53, %s58
      %p60 = scmp.eq.s32.totalorder %s59, 0
      %s62 = sadd.s32 %s61, 1
      %s63 = scalar_select %p60, %s61, %s62
      %p66 = pneg %p60
      %p67 = scmp.eq.s32.totalorder %s22, 1
      %p68 = por %p66, %p67
      %p69 = scmp.ne.s32.totalorder %s61, %s64
      %p70 = scmp.eq.s32.totalorder %s22, 0
      %p71 = por %p69, %p70
      %p72 = scmp.ne.s32.totalorder %s61, %s64
      %p73 = scmp.eq.s32.totalorder %s27, 1
      %p74 = por %p72, %p73
      %p75 = scmp.ne.s32.totalorder %s64, %s65
      %p76 = scmp.eq.s32.totalorder %s27, 0
      %p77 = por %p75, %p76
      %p78 = scmp.ne.s32.totalorder %s64, %s65
      %p79 = scmp.eq.s32.totalorder %s28, 1
      %p80 = por %p78, %p79
      %p82 = scmp.ne.s32.totalorder %s65, %s81
      %p83 = scmp.eq.s32.totalorder %s28, 0
      %p84 = por %p82, %p83
      %s85 = ssub.s32 %s30, %s44
      %s86 = ssub.s32 %s31, %s40
      %s87 = sor.u32 %s85, %s86
      %p88 = scmp.eq.s32.totalorder %s87, 0
      %s90 = sadd.s32 %s89, 1
      %s91 = scalar_select %p88, %s89, %s90
      %p94 = pneg %p88
      %p95 = scmp.eq.s32.totalorder %s22, 1
      %p96 = por %p94, %p95
      %p97 = scmp.ne.s32.totalorder %s89, %s92
      %p98 = scmp.eq.s32.totalorder %s22, 0
      %p99 = por %p97, %p98
      %p100 = scmp.ne.s32.totalorder %s89, %s92
      %p101 = scmp.eq.s32.totalorder %s27, 1
      %p102 = por %p100, %p101
      %p103 = scmp.ne.s32.totalorder %s92, %s93
      %p104 = scmp.eq.s32.totalorder %s27, 0
      %p105 = por %p103, %p104
      %p106 = scmp.ne.s32.totalorder %s92, %s93
      %p107 = scmp.eq.s32.totalorder %s28, 1
      %p108 = por %p106, %p107
      %p110 = scmp.ne.s32.totalorder %s93, %s109
      %p111 = scmp.eq.s32.totalorder %s28, 0
      %p112 = por %p110, %p111
      %p113 = scmp.eq.s32.totalorder %s29, 1
      %s114 = scalar_select %p113, %s30, 0
      %p115 = scmp.eq.s32.totalorder %s48, 1
      %s116 = scalar_select %p115, %s44, 0
      %s117 = ssub.s32 %s114, %s116
      %p118 = scmp.eq.s32.totalorder %s117, 0
      %s120 = sadd.s32 %s119, 1
      %s121 = scalar_select %p118, %s119, %s120
      %p124 = pneg %p118
      %p125 = scmp.eq.s32.totalorder %s22, 1
      %p126 = por %p124, %p125
      %p127 = scmp.ne.s32.totalorder %s119, %s122
      %p128 = scmp.eq.s32.totalorder %s22, 0
      %p129 = por %p127, %p128
      %p130 = scmp.ne.s32.totalorder %s119, %s122
      %p131 = scmp.eq.s32.totalorder %s27, 1
      %p132 = por %p130, %p131
      %p133 = scmp.ne.s32.totalorder %s122, %s123
      %p134 = scmp.eq.s32.totalorder %s27, 0
      %p135 = por %p133, %p134
      %p136 = scmp.ne.s32.totalorder %s122, %s123
      %p137 = scmp.eq.s32.totalorder %s28, 1
      %p138 = por %p136, %p137
      %p140 = scmp.ne.s32.totalorder %s123, %s139
      %p141 = scmp.eq.s32.totalorder %s28, 0
      %p142 = por %p140, %p141
      %s143 = ssub.s32 %s29, %s48
      %p144 = scmp.eq.s32.totalorder %s143, 0
      %s146 = sadd.s32 %s145, 1
      %s147 = scalar_select %p144, %s145, %s146
      %p150 = pneg %p144
      %p151 = scmp.eq.s32.totalorder %s22, 1
      %p152 = por %p150, %p151
      %p153 = scmp.ne.s32.totalorder %s145, %s148
      %p154 = scmp.eq.s32.totalorder %s22, 0
      %p155 = por %p153, %p154
      %p156 = scmp.ne.s32.totalorder %s145, %s148
      %p157 = scmp.eq.s32.totalorder %s27, 1
      %p158 = por %p156, %p157
      %p159 = scmp.ne.s32.totalorder %s148, %s149
      %p160 = scmp.eq.s32.totalorder %s27, 0
      %p161 = por %p159, %p160
      %p162 = scmp.ne.s32.totalorder %s148, %s149
      %p163 = scmp.eq.s32.totalorder %s28, 1
      %p164 = por %p162, %p163
      %p166 = scmp.ne.s32.totalorder %s149, %s165
      %p167 = scmp.eq.s32.totalorder %s28, 0
      %p168 = por %p166, %p167
      %s169 = ssub.s32 %s29, %s48
      %p170 = scmp.eq.s32.totalorder %s169, 0
      %s172 = sadd.s32 %s171, 1
      %s173 = scalar_select %p170, %s171, %s172
      %p176 = pneg %p170
      %p177 = scmp.eq.s32.totalorder %s22, 1
      %p178 = por %p176, %p177
      %p179 = scmp.ne.s32.totalorder %s171, %s174
      %p180 = scmp.eq.s32.totalorder %s22, 0
      %p181 = por %p179, %p180
      %p182 = scmp.ne.s32.totalorder %s171, %s174
      %p183 = scmp.eq.s32.totalorder %s27, 1
      %p184 = por %p182, %p183
      %p185 = scmp.ne.s32.totalorder %s174, %s175
      %p186 = scmp.eq.s32.totalorder %s27, 0
      %p187 = por %p185, %p186
      %p188 = scmp.ne.s32.totalorder %s174, %s175
      %p189 = scmp.eq.s32.totalorder %s28, 1
      %p190 = por %p188, %p189
      %p192 = scmp.ne.s32.totalorder %s175, %s191
      %p193 = scmp.eq.s32.totalorder %s28, 0
      %p194 = por %p192, %p193
      %s195 = ssub.s32 %s29, %s48
      %p196 = scmp.eq.s32.totalorder %s195, 0
      %s198 = sadd.s32 %s197, 1
      %s199 = scalar_select %p196, %s197, %s198
      %p202 = pneg %p196
      %p203 = scmp.eq.s32.totalorder %s22, 1
      %p204 = por %p202, %p203
      %p205 = scmp.ne.s32.totalorder %s197, %s200
      %p206 = scmp.eq.s32.totalorder %s22, 0
      %p207 = por %p205, %p206
      %p208 = scmp.ne.s32.totalorder %s197, %s200
      %p209 = scmp.eq.s32.totalorder %s27, 1
      %p210 = por %p208, %p209
      %p211 = scmp.ne.s32.totalorder %s200, %s201
      %p212 = scmp.eq.s32.totalorder %s27, 0
      %p213 = por %p211, %p212
      %p214 = scmp.ne.s32.totalorder %s200, %s201
      %p215 = scmp.eq.s32.totalorder %s28, 1
      %p216 = por %p214, %p215
      %p218 = scmp.ne.s32.totalorder %s201, %s217
      %p219 = scmp.eq.s32.totalorder %s28, 0
      %p220 = por %p218, %p219
      %s222 = sadd.s32 %s221, 1
      %p225 = scmp.eq.s32.totalorder %s22, 1
      %p226 = scmp.ne.s32.totalorder %s221, %s223
      %p227 = scmp.eq.s32.totalorder %s22, 0
      %p228 = por %p226, %p227
      %p229 = scmp.ne.s32.totalorder %s221, %s223
      %p230 = scmp.eq.s32.totalorder %s27, 1
      %p231 = por %p229, %p230
      %p232 = scmp.ne.s32.totalorder %s223, %s224
      %p233 = scmp.eq.s32.totalorder %s27, 0
      %p234 = por %p232, %p233
      %p235 = scmp.ne.s32.totalorder %s223, %s224
      %p236 = scmp.eq.s32.totalorder %s28, 1
      %p237 = por %p235, %p236
      %p239 = scmp.ne.s32.totalorder %s224, %s238
      %p240 = scmp.eq.s32.totalorder %s28, 0
      %p241 = por %p239, %p240
      %s243 = sadd.s32 %s242, 1
      %p246 = scmp.eq.s32.totalorder %s22, 1
      %p247 = scmp.ne.s32.totalorder %s242, %s244
      %p248 = scmp.eq.s32.totalorder %s22, 0
      %p249 = por %p247, %p248
      %p250 = scmp.ne.s32.totalorder %s242, %s244
      %p251 = scmp.eq.s32.totalorder %s27, 1
      %p252 = por %p250, %p251
      %p253 = scmp.ne.s32.totalorder %s244, %s245
      %p254 = scmp.eq.s32.totalorder %s27, 0
      %p255 = por %p253, %p254
      %p256 = scmp.ne.s32.totalorder %s244, %s245
      %p257 = scmp.eq.s32.totalorder %s28, 1
      %p258 = por %p256, %p257
      %p260 = scmp.ne.s32.totalorder %s245, %s259
      %p261 = scmp.eq.s32.totalorder %s28, 0
      %p262 = por %p260, %p261
      %s264 = sadd.s32 %s263, 1
      %p267 = scmp.eq.s32.totalorder %s22, 1
      %p268 = scmp.ne.s32.totalorder %s263, %s265
      %p269 = scmp.eq.s32.totalorder %s22, 0
      %p270 = por %p268, %p269
      %p271 = scmp.ne.s32.totalorder %s263, %s265
      %p272 = scmp.eq.s32.totalorder %s27, 1
      %p273 = por %p271, %p272
      %p274 = scmp.ne.s32.totalorder %s265, %s266
      %p275 = scmp.eq.s32.totalorder %s27, 0
      %p276 = por %p274, %p275
      %p277 = scmp.ne.s32.totalorder %s265, %s266
      %p278 = scmp.eq.s32.totalorder %s28, 1
      %p279 = por %p277, %p278
      %p281 = scmp.ne.s32.totalorder %s266, %s280
      %p282 = scmp.eq.s32.totalorder %s28, 0
      %p283 = por %p281, %p282
      %s285 = sadd.s32 %s284, 1
      %p288 = scmp.eq.s32.totalorder %s22, 1
      %p289 = scmp.ne.s32.totalorder %s284, %s286
      %p290 = scmp.eq.s32.totalorder %s22, 0
      %p291 = por %p289, %p290
      %p292 = scmp.ne.s32.totalorder %s284, %s286
      %p293 = scmp.eq.s32.totalorder %s27, 1
      %p294 = por %p292, %p293
      %p295 = scmp.ne.s32.totalorder %s286, %s287
      %p296 = scmp.eq.s32.totalorder %s27, 0
      %p297 = por %p295, %p296
      %p298 = scmp.ne.s32.totalorder %s286, %s287
      %p299 = scmp.eq.s32.totalorder %s28, 1
      %p300 = por %p298, %p299
      %p302 = scmp.ne.s32.totalorder %s287, %s301
      %p303 = scmp.eq.s32.totalorder %s28, 0
      %p304 = por %p302, %p303
      %s306 = sadd.s32 %s305, 1
      %p309 = scmp.eq.s32.totalorder %s22, 1
      %p310 = scmp.ne.s32.totalorder %s305, %s307
      %p311 = scmp.eq.s32.totalorder %s22, 0
      %p312 = por %p310, %p311
      %p313 = scmp.ne.s32.totalorder %s305, %s307
      %p314 = scmp.eq.s32.totalorder %s27, 1
      %p315 = por %p313, %p314
      %p316 = scmp.ne.s32.totalorder %s307, %s308
      %p317 = scmp.eq.s32.totalorder %s27, 0
      %p318 = por %p316, %p317
      %p319 = scmp.ne.s32.totalorder %s307, %s308
      %p320 = scmp.eq.s32.totalorder %s28, 1
      %p321 = por %p319, %p320
      %p323 = scmp.ne.s32.totalorder %s308, %s322
      %p324 = scmp.eq.s32.totalorder %s28, 0
      %p325 = por %p323, %p324
      %p326 = scmp.le.s32.totalorder 1, %s22
      %p327 = scmp.lt.s32.totalorder %s22, 3
      %p328 = pnand %p326, %p327
      %p329 = pneg %p328
      // Predicated region
      $region9: #{tpu_custom_call.1} parent=5 // pred_check
        _
      $region10: #{tpu_custom_call.1} parent=5 // pred_check_branch
        %331 = sbr.rel (%p328) target = $region12
      $region11: #{tpu_custom_call.1} parent=5 // pred_region
        %s332 = ssub.s32 %s22, 1
        // Predicated region
        $region13: #{tpu_custom_call.1} parent=11 // pred_check
          %p333 = pneg %p105
        $region14: #{tpu_custom_call.1} parent=11 // pred_check_branch
          %335 = sbr.rel (%p333) target = $region16
        $region15: #{tpu_custom_call.1} parent=11 // pred_region
          %s336 = smul.u32 4, %s33
          %s338 = ssub.s32 512, 512
          %339 = vsyncadd [#allocation9], %s338
          %s340 = sadd.s32 %s34, %s336
          %s341 = smul.addr %s340, 128
          %s342 = scalar_lea.hbm %s1, %s341
          %s343 = sshll.u32 [#allocation8], 4
          %s344 = int_to_ptr.vmem [resolvable:$true] %s343
          %349 = dma.hbm_to_vmem [thread:$0]  %s342, 512, %s344, [#allocation9], 128, 128, 8
        $region16: #{tpu_custom_call.1} parent=11 // pred_fallthru
          _
        // Predicated region
        $region17: #{tpu_custom_call.1} parent=11 // pred_check
          %p350 = pneg %p234
        $region18: #{tpu_custom_call.1} parent=11 // pred_check_branch
          %352 = sbr.rel (%p350) target = $region20
        $region19: #{tpu_custom_call.1} parent=11 // pred_region
          %s354 = ssub.s32 1024, 1024
          %355 = vsyncadd [#allocation9], %s354
          %s356 = sshll.u32 [#allocation12], 4
          %s357 = int_to_ptr.vmem [resolvable:$true] %s356
          %362 = dma.hbm_to_vmem [thread:$0]  %s6, 1024, %s357, [#allocation9], 64, 64, 4
        $region20: #{tpu_custom_call.1} parent=11 // pred_fallthru
          _
        // Predicated region
        $region21: #{tpu_custom_call.1} parent=11 // pred_check
          %p363 = pneg %p255
        $region22: #{tpu_custom_call.1} parent=11 // pred_check_branch
          %365 = sbr.rel (%p363) target = $region24
        $region23: #{tpu_custom_call.1} parent=11 // pred_region
          _
        $region24: #{tpu_custom_call.1} parent=11 // pred_fallthru
          _
        // Predicated region
        $region25: #{tpu_custom_call.1} parent=11 // pred_check
          %p366 = pneg %p276
        $region26: #{tpu_custom_call.1} parent=11 // pred_check_branch
          %368 = sbr.rel (%p366) target = $region28
        $region27: #{tpu_custom_call.1} parent=11 // pred_region
          %s370 = ssub.s32 1024, 1024
          %371 = vsyncadd [#allocation14], %s370
          %s372 = sshll.u32 [#allocation13], 4
          %s373 = int_to_ptr.vmem [resolvable:$true] %s372
          %378 = dma.hbm_to_vmem [thread:$0]  %s8, 1024, %s373, [#allocation14], 64, 64, 4
        $region28: #{tpu_custom_call.1} parent=11 // pred_fallthru
          _
        // Predicated region
        $region29: #{tpu_custom_call.1} parent=11 // pred_check
          %p379 = pneg %p297
        $region30: #{tpu_custom_call.1} parent=11 // pred_check_branch
          %381 = sbr.rel (%p379) target = $region32
        $region31: #{tpu_custom_call.1} parent=11 // pred_region
          _
        $region32: #{tpu_custom_call.1} parent=11 // pred_fallthru
          _
      $region12: #{tpu_custom_call.1} parent=5 // pred_fallthru
        _
      %p382 = scmp.lt.s32.totalorder %s22, 2
      // Predicated region
      $region33: #{tpu_custom_call.1} parent=5 // pred_check
        %p383 = pneg %p382
      $region34: #{tpu_custom_call.1} parent=5 // pred_check_branch
        %385 = sbr.rel (%p383) target = $region36
      $region35: #{tpu_custom_call.1} parent=5 // pred_region
        // Predicated region
        $region37: #{tpu_custom_call.1} parent=35 // pred_check
          %p386 = pneg %p71
        $region38: #{tpu_custom_call.1} parent=35 // pred_check_branch
          %388 = sbr.rel (%p386) target = $region40
        $region39: #{tpu_custom_call.1} parent=35 // pred_region
          %s389 = sand.u32 %s22, 1
          %s390 = scalar_lea.sflag [#allocation6], %s389
          %s391 = sand.u32 %s61, 1
          %s392 = smul.addr %s391, 64
          %s393 = scalar_lea.vmem [#allocation5], %s392
          %p394 = scmp.eq.s32.totalorder %s29, 0
          %p395 = scmp.eq.s32.totalorder %s30, 0
          %p396 = pnand %p394, %p395
          %p397 = pneg %p396
          %s398 = scalar_select %p397, %s31, 0
          %s399 = smul.u32 16, %s398
          %s401 = ssub.s32 1024, 1024
          %402 = vsyncadd %s390, %s401
          %s403 = smul.addr %s399, 64
          %s404 = scalar_lea.hbm %s0, %s403
          %s405 = sshll.u32 %s393, 4
          %s406 = int_to_ptr.vmem [resolvable:$true] %s405
          %411 = dma.hbm_to_vmem [thread:$0]  %s404, 1024, %s406, %s390, 64, 64, 4
        $region40: #{tpu_custom_call.1} parent=35 // pred_fallthru
          _
        // Predicated region
        $region41: #{tpu_custom_call.1} parent=35 // pred_check
          %p412 = pneg %p129
        $region42: #{tpu_custom_call.1} parent=35 // pred_check_branch
          %414 = sbr.rel (%p412) target = $region44
        $region43: #{tpu_custom_call.1} parent=35 // pred_region
          %p415 = scmp.eq.s32.totalorder %s29, 1
          %s416 = scalar_select %p415, %s30, 0
          %p417 = scmp.lt.s32.totalorder %s416, 0
          %s418 = scalar_select %p417, %s416, 0
          %s419 = smul.addr %s418, 4
          %s420 = scalar_lea.vmem %s2, %s419
          %p421 = scmp.eq.s32.totalorder %s29, 1
          %s422 = scalar_select %p421, %s30, 0
        $region44: #{tpu_custom_call.1} parent=35 // pred_fallthru
          _
        // Predicated region
        $region45: #{tpu_custom_call.1} parent=35 // pred_check
          %p423 = pneg %p155
        $region46: #{tpu_custom_call.1} parent=35 // pred_check_branch
          %425 = sbr.rel (%p423) target = $region48
        $region47: #{tpu_custom_call.1} parent=35 // pred_region
          %s426 = sand.u32 %s22, 1
          %s427 = scalar_lea.sflag [#allocation6], %s426
          %s428 = sand.u32 %s145, 1
          %s429 = smul.addr %s428, 64
          %s430 = scalar_lea.vmem [#allocation10], %s429
          %s432 = ssub.s32 1024, 1024
          %433 = vsyncadd %s427, %s432
          %s434 = smul.addr %s29, 16
          %s435 = smul.addr %s434, 64
          %s436 = scalar_lea.hbm %s3, %s435
          %s437 = sshll.u32 %s430, 4
          %s438 = int_to_ptr.vmem [resolvable:$true] %s437
          %443 = dma.hbm_to_vmem [thread:$0]  %s436, 1024, %s438, %s427, 64, 64, 4
        $region48: #{tpu_custom_call.1} parent=35 // pred_fallthru
          _
        // Predicated region
        $region49: #{tpu_custom_call.1} parent=35 // pred_check
          %p444 = pneg %p181
        $region50: #{tpu_custom_call.1} parent=35 // pred_check_branch
          %446 = sbr.rel (%p444) target = $region52
        $region51: #{tpu_custom_call.1} parent=35 // pred_region
          %s447 = sand.u32 %s22, 1
          %s448 = scalar_lea.sflag [#allocation6], %s447
          %s449 = sand.u32 %s171, 1
          %s450 = smul.addr %s449, 64
          %s451 = scalar_lea.vmem [#allocation11], %s450
          %s453 = ssub.s32 1024, 1024
          %454 = vsyncadd %s448, %s453
          %s455 = smul.addr %s29, 16
          %s456 = smul.addr %s455, 64
          %s457 = scalar_lea.hbm %s4, %s456
          %s458 = sshll.u32 %s451, 4
          %s459 = int_to_ptr.vmem [resolvable:$true] %s458
          %464 = dma.hbm_to_vmem [thread:$0]  %s457, 1024, %s459, %s448, 64, 64, 4
        $region52: #{tpu_custom_call.1} parent=35 // pred_fallthru
          _
        // Predicated region
        $region53: #{tpu_custom_call.1} parent=35 // pred_check
          %p465 = pneg %p207
        $region54: #{tpu_custom_call.1} parent=35 // pred_check_branch
          %467 = sbr.rel (%p465) target = $region56
        $region55: #{tpu_custom_call.1} parent=35 // pred_region
          %p468 = scmp.lt.s32.totalorder %s29, 1
          %s469 = scalar_select %p468, %s29, 1
          %s470 = scalar_lea.vmem %s5, %s469
        $region56: #{tpu_custom_call.1} parent=35 // pred_fallthru
          _
      $region36: #{tpu_custom_call.1} parent=5 // pred_fallthru
        _
      %p471 = scmp.le.s32.totalorder 1, %s22
      %p472 = scmp.lt.s32.totalorder %s22, 3
      %p473 = pnand %p471, %p472
      %p474 = pneg %p473
      // Predicated region
      $region57: #{tpu_custom_call.1} parent=5 // pred_check
        _
      $region58: #{tpu_custom_call.1} parent=5 // pred_check_branch
        %476 = sbr.rel (%p473) target = $region60
      $region59: #{tpu_custom_call.1} parent=5 // pred_region
        %s477 = ssub.s32 %s22, 1
        %s478 = sand.u32 %s27, 1
        %s479 = scalar_lea.sflag [#allocation6], %s478
        %s480 = sand.u32 %s64, 1
        %s481 = smul.addr %s480, 64
        %s482 = scalar_lea.vmem [#allocation5], %s481
        // Predicated region
        $region61: #{tpu_custom_call.1} parent=59 // pred_check
          %p483 = pneg %p77
        $region62: #{tpu_custom_call.1} parent=59 // pred_check_branch
          %485 = sbr.rel (%p483) target = $region64
        $region63: #{tpu_custom_call.1} parent=59 // pred_region
          %486 = dma.done %s479, 1024
        $region64: #{tpu_custom_call.1} parent=59 // pred_fallthru
          _
        // Predicated region
        $region65: #{tpu_custom_call.1} parent=59 // pred_check
          %p487 = pneg %p105
        $region66: #{tpu_custom_call.1} parent=59 // pred_check_branch
          %489 = sbr.rel (%p487) target = $region68
        $region67: #{tpu_custom_call.1} parent=59 // pred_region
          %490 = dma.done [#allocation9], 512
        $region68: #{tpu_custom_call.1} parent=59 // pred_fallthru
          _
        %s491 = sand.u32 %s27, 1
        %s492 = scalar_lea.sflag [#allocation6], %s491
        %s493 = sand.u32 %s148, 1
        %s494 = smul.addr %s493, 64
        %s495 = scalar_lea.vmem [#allocation10], %s494
        // Predicated region
        $region69: #{tpu_custom_call.1} parent=59 // pred_check
          %p496 = pneg %p161
        $region70: #{tpu_custom_call.1} parent=59 // pred_check_branch
          %498 = sbr.rel (%p496) target = $region72
        $region71: #{tpu_custom_call.1} parent=59 // pred_region
          %499 = dma.done %s492, 1024
        $region72: #{tpu_custom_call.1} parent=59 // pred_fallthru
          _
        %s500 = sand.u32 %s27, 1
        %s501 = scalar_lea.sflag [#allocation6], %s500
        %s502 = sand.u32 %s174, 1
        %s503 = smul.addr %s502, 64
        %s504 = scalar_lea.vmem [#allocation11], %s503
        // Predicated region
        $region73: #{tpu_custom_call.1} parent=59 // pred_check
          %p505 = pneg %p187
        $region74: #{tpu_custom_call.1} parent=59 // pred_check_branch
          %507 = sbr.rel (%p505) target = $region76
        $region75: #{tpu_custom_call.1} parent=59 // pred_region
          %508 = dma.done %s501, 1024
        $region76: #{tpu_custom_call.1} parent=59 // pred_fallthru
          _
        // Predicated region
        $region77: #{tpu_custom_call.1} parent=59 // pred_check
          %p509 = pneg %p234
        $region78: #{tpu_custom_call.1} parent=59 // pred_check_branch
          %511 = sbr.rel (%p509) target = $region80
        $region79: #{tpu_custom_call.1} parent=59 // pred_region
          %512 = dma.done [#allocation9], 1024
        $region80: #{tpu_custom_call.1} parent=59 // pred_fallthru
          _
        // Predicated region
        $region81: #{tpu_custom_call.1} parent=59 // pred_check
          %p513 = pneg %p276
        $region82: #{tpu_custom_call.1} parent=59 // pred_check_branch
          %515 = sbr.rel (%p513) target = $region84
        $region83: #{tpu_custom_call.1} parent=59 // pred_region
          %516 = dma.done [#allocation14], 1024
        $region84: #{tpu_custom_call.1} parent=59 // pred_fallthru
          _
        %s517 = sand.u32 %s27, 1
        %s518 = scalar_lea.sflag [#allocation6], %s517
        %s519 = sand.u32 %s64, 1
        %s520 = smul.addr %s519, 64
        %s521 = scalar_lea.vmem [#allocation5], %s520
        %p522 = pneg %p77
        %p523 = pneg %p74
        %p524 = pneg %p105
        %p525 = pneg %p102
        %p526 = scmp.eq.s32.totalorder %s32, 1
        %s527 = scalar_select %p526, %s33, 0
        %p528 = scmp.lt.s32.totalorder %s527, 0
        %s529 = scalar_select %p528, %s527, 0
        %s530 = smul.addr %s529, 4
        %s531 = scalar_lea.vmem %s2, %s530
        %p532 = pneg %p135
        %p533 = pneg %p132
        %s534 = sand.u32 %s27, 1
        %s535 = scalar_lea.sflag [#allocation6], %s534
        %s536 = sand.u32 %s148, 1
        %s537 = smul.addr %s536, 64
        %s538 = scalar_lea.vmem [#allocation10], %s537
        %p539 = pneg %p161
        %p540 = pneg %p158
        %s541 = sand.u32 %s27, 1
        %s542 = scalar_lea.sflag [#allocation6], %s541
        %s543 = sand.u32 %s174, 1
        %s544 = smul.addr %s543, 64
        %s545 = scalar_lea.vmem [#allocation11], %s544
        %p546 = pneg %p187
        %p547 = pneg %p184
        %p548 = scmp.lt.s32.totalorder %s32, 1
        %s549 = scalar_select %p548, %s32, 1
        %s550 = scalar_lea.vmem %s5, %s549
        %p551 = pneg %p213
        %p552 = pneg %p210
        %p553 = pneg %p234
        %p554 = pneg %p231
        %p555 = pneg %p255
        %p556 = pneg %p252
        %p557 = pneg %p276
        %p558 = pneg %p273
        %p559 = pneg %p297
        %p560 = pneg %p294
        %p561 = pneg %p318
        %p562 = pneg %p315
        %p563 = scmp.eq.s32.totalorder %s32, 0
        %p564 = scmp.eq.s32.totalorder %s33, 0
        %p565 = pnand %p563, %p564
        %p566 = pneg %p565
        %s567 = scalar_select %p566, %s34, 0
        %s568 = smul.u32 16, %s567
        %s569 = smul.u32 4, %s33
        %p570 = scmp.eq.s32.totalorder %s32, 1
        %s571 = scalar_select %p570, %s33, 0
        %p572 = scmp.lt.s32.totalorder %s571, 0
        %s573 = scalar_select %p572, %s571, 0
        %s574 = smul.addr %s573, 4
        %s575 = scalar_lea.vmem %s2, %s574
        %p576 = scmp.eq.s32.totalorder %s32, 1
        %s577 = scalar_select %p576, %s33, 0
        %p578 = scmp.lt.s32.totalorder %s32, 1
        %s579 = scalar_select %p578, %s32, 1
        %s580 = scalar_lea.vmem %s5, %s579
        %p582 = scmp.eq.s32.totalorder %s32, 0
        %p583 = scmp.eq.s32.totalorder %s33, 0
        %p584 = pnand %p582, %p583
        %p585 = pneg %p584
        %p586 = scmp.eq.s32.totalorder %s34, 0
        %p587 = pnand %p585, %p586
        %p588 = pneg %p587
        // Predicated region
        $region85: #{tpu_custom_call.1} parent=59 // pred_check
          _
        $region86: #{tpu_custom_call.1} parent=59 // pred_check_branch
          %590 = sbr.rel (%p587) target = $region88
        $region87: #{tpu_custom_call.1} parent=59 // pred_region
          %591 = vst [vmem:[#allocation4] sm:$0xff] 0.0
        $region88: #{tpu_custom_call.1} parent=59 // pred_fallthru
          _
        // Predicated region
        $region89: #{tpu_custom_call.1} parent=59 // pred_check
          _
        $region90: #{tpu_custom_call.1} parent=59 // pred_check_branch
          %593 = sbr.rel (%p584) target = $region92
        $region91: #{tpu_custom_call.1} parent=59 // pred_region
          %s594 = smul.u32 %s34, 128
          %v595 = vld [vmem:[%s482] sm:$0xf]
          %v596 = vld [vmem:[%s482 + $0x4] sm:$0xf]
          %v597 = vld [vmem:[%s482 + $0x8] sm:$0xf]
          %v598 = vld [vmem:[%s482 + $0xc] sm:$0xf]
          %v599 = vld [vmem:[%s482 + $0x10] sm:$0xf]
          %v600 = vld [vmem:[%s482 + $0x14] sm:$0xf]
          %v601 = vld [vmem:[%s482 + $0x18] sm:$0xf]
          %v602 = vld [vmem:[%s482 + $0x1c] sm:$0xf]
          %v603 = vld [vmem:[%s482 + $0x20] sm:$0xf]
          %v604 = vld [vmem:[%s482 + $0x24] sm:$0xf]
          %v605 = vld [vmem:[%s482 + $0x28] sm:$0xf]
          %v606 = vld [vmem:[%s482 + $0x2c] sm:$0xf]
          %v607 = vld [vmem:[%s482 + $0x30] sm:$0xf]
          %v608 = vld [vmem:[%s482 + $0x34] sm:$0xf]
          %v609 = vld [vmem:[%s482 + $0x38] sm:$0xf]
          %v610 = vld [vmem:[%s482 + $0x3c] sm:$0xf]
          %v627 = vunpack.c.l.b16 %v595
          %v628 = vunpack.c.l.b16 %v596
          %v629 = vunpack.c.l.b16 %v597
          %v630 = vunpack.c.l.b16 %v598
          %v631 = vunpack.c.l.b16 %v599
          %v632 = vunpack.c.l.b16 %v600
          %v633 = vunpack.c.l.b16 %v601
          %v634 = vunpack.c.l.b16 %v602
          %v635 = vunpack.c.l.b16 %v603
          %v636 = vunpack.c.l.b16 %v604
          %v637 = vunpack.c.l.b16 %v605
          %v638 = vunpack.c.l.b16 %v606
          %v639 = vunpack.c.l.b16 %v607
          %v640 = vunpack.c.l.b16 %v608
          %v641 = vunpack.c.l.b16 %v609
          %v642 = vunpack.c.l.b16 %v610
          %v643 = vpack.c.b16 %v628, %v627
          %v644 = vpack.c.b16 %v630, %v629
          %v645 = vpack.c.b16 %v632, %v631
          %v646 = vpack.c.b16 %v634, %v633
          %v647 = vpack.c.b16 %v636, %v635
          %v648 = vpack.c.b16 %v638, %v637
          %v649 = vpack.c.b16 %v640, %v639
          %v650 = vpack.c.b16 %v642, %v641
          %s659 = sshra.s32 %s594, 4
          %s660 = sand.u32 %s594, 15
          %s661 = sadd.s32 %s659, 8
          %s662 = smul.addr %s661, 8
          %s663 = scalar_lea.vmem [#allocation2], %s662
          %664 = vst [vmem:[%s663] sm:$0xff] %v643
          %665 = vst [vmem:[%s663 + $0x8] sm:$0xff] %v644
          %666 = vst [vmem:[%s663 + $0x10] sm:$0xff] %v645
          %667 = vst [vmem:[%s663 + $0x18] sm:$0xff] %v646
          %668 = vst [vmem:[%s663 + $0x20] sm:$0xff] %v647
          %669 = vst [vmem:[%s663 + $0x28] sm:$0xff] %v648
          %670 = vst [vmem:[%s663 + $0x30] sm:$0xff] %v649
          %671 = vst [vmem:[%s663 + $0x38] sm:$0xff] %v650
        $region92: #{tpu_custom_call.1} parent=59 // pred_fallthru
          _
        %s672 = sadd.s32 %s32, 1
        %p673 = scmp.lt.s32.totalorder %s672, 0
        %s674 = ssub.s32 0, %s672
        %s675 = scalar_select %p673, %s674, %s672
        %s676 = sand.u32 %s675, 1
        %s677 = ssub.s32 0, %s676
        %s678 = scalar_select %p673, %s677, %s676
        %p679 = scmp.ne.s32.totalorder %s678, 0
        %p680 = scmp.lt.s32.totalorder %s678, 0
        %p681 = pnand %p680, %p679
        %p682 = pneg %p681
        %s683 = sadd.s32 %s678, 2
        %s684 = scalar_select %p682, %s683, %s678
        %p685 = scmp.lt.s32.totalorder %s32, 0
        %s686 = ssub.s32 0, %s32
        %s687 = scalar_select %p685, %s686, %s32
        %s688 = sand.u32 %s687, 1
        %s689 = ssub.s32 0, %s688
        %s690 = scalar_select %p685, %s689, %s688
        %p691 = scmp.ne.s32.totalorder %s690, 0
        %p692 = scmp.lt.s32.totalorder %s690, 0
        %p693 = pnand %p692, %p691
        %p694 = pneg %p693
        %s695 = sadd.s32 %s690, 2
        %s696 = scalar_select %p694, %s695, %s690
        // Predicated region
        $region93: #{tpu_custom_call.1} parent=59 // pred_check
          %p697 = pneg %p586
        $region94: #{tpu_custom_call.1} parent=59 // pred_check_branch
          %699 = sbr.rel (%p697) target = $region96
        $region95: #{tpu_custom_call.1} parent=59 // pred_region
          %700 = vst [vmem:[#allocation3] sm:$0xff] 0.0
          %701 = vst [vmem:[#allocation3 + $0x8] sm:$0xff] 0.0
          %702 = vst [vmem:[#allocation3 + $0x10] sm:$0xff] 0.0
          %703 = vst [vmem:[#allocation3 + $0x18] sm:$0xff] 0.0
          %704 = vst [vmem:[#allocation3 + $0x20] sm:$0xff] 0.0
          %705 = vst [vmem:[#allocation3 + $0x28] sm:$0xff] 0.0
          %706 = vst [vmem:[#allocation3 + $0x30] sm:$0xff] 0.0
          %707 = vst [vmem:[#allocation3 + $0x38] sm:$0xff] 0.0
          %708 = vst [vmem:[#allocation3 + $0x40] sm:$0xff] 0.0
          %709 = vst [vmem:[#allocation3 + $0x48] sm:$0xff] 0.0
          %710 = vst [vmem:[#allocation3 + $0x50] sm:$0xff] 0.0
          %711 = vst [vmem:[#allocation3 + $0x58] sm:$0xff] 0.0
          %712 = vst [vmem:[#allocation3 + $0x60] sm:$0xff] 0.0
          %713 = vst [vmem:[#allocation3 + $0x68] sm:$0xff] 0.0
          %714 = vst [vmem:[#allocation3 + $0x70] sm:$0xff] 0.0
          %715 = vst [vmem:[#allocation3 + $0x78] sm:$0xff] 0.0
        $region96: #{tpu_custom_call.1} parent=59 // pred_fallthru
          _
        %s716 = smul.u32 %s34, 128
        %s717 = sshra.s32 %s716, 4
        %s718 = sand.u32 %s716, 15
        %s719 = smul.u32 %s684, 8
        %s720 = sadd.s32 %s717, %s719
        %s721 = smul.addr %s720, 8
        %s722 = scalar_lea.vmem [#allocation2], %s721
        %v723 = vld [vmem:[%s722] sm:$0xff]
        %v724 = vld [vmem:[%s722 + $0x8] sm:$0xff]
        %v725 = vld [vmem:[%s722 + $0x10] sm:$0xff]
        %v726 = vld [vmem:[%s722 + $0x18] sm:$0xff]
        %v727 = vld [vmem:[%s722 + $0x20] sm:$0xff]
        %v728 = vld [vmem:[%s722 + $0x28] sm:$0xff]
        %v729 = vld [vmem:[%s722 + $0x30] sm:$0xff]
        %v730 = vld [vmem:[%s722 + $0x38] sm:$0xff]
        %v731 = vld [vmem:[#allocation8] sm:$0xff]
        %v732 = vld [vmem:[#allocation8 + $0x8] sm:$0xff]
        %v733 = vld [vmem:[#allocation8 + $0x10] sm:$0xff]
        %v734 = vld [vmem:[#allocation8 + $0x18] sm:$0xff]
        %v735 = vunpack.c.l.s8.bf16 %v731
        %v736 = vunpack.c.h.s8.bf16 %v731
        %v737 = vunpack.c.l.s8.bf16 %v732
        %v738 = vunpack.c.h.s8.bf16 %v732
        %v739 = vunpack.c.l.s8.bf16 %v733
        %v740 = vunpack.c.h.s8.bf16 %v733
        %v741 = vunpack.c.l.s8.bf16 %v734
        %v742 = vunpack.c.h.s8.bf16 %v734
        %v743 = vld [vmem:[#allocation3] sm:$0xff]
        %v744 = vld [vmem:[#allocation3 + $0x8] sm:$0xff]
        %v745 = vld [vmem:[#allocation3 + $0x10] sm:$0xff]
        %v746 = vld [vmem:[#allocation3 + $0x18] sm:$0xff]
        %v747 = vld [vmem:[#allocation3 + $0x20] sm:$0xff]
        %v748 = vld [vmem:[#allocation3 + $0x28] sm:$0xff]
        %v749 = vld [vmem:[#allocation3 + $0x30] sm:$0xff]
        %v750 = vld [vmem:[#allocation3 + $0x38] sm:$0xff]
        %v751 = vld [vmem:[#allocation3 + $0x40] sm:$0xff]
        %v752 = vld [vmem:[#allocation3 + $0x48] sm:$0xff]
        %v753 = vld [vmem:[#allocation3 + $0x50] sm:$0xff]
        %v754 = vld [vmem:[#allocation3 + $0x58] sm:$0xff]
        %v755 = vld [vmem:[#allocation3 + $0x60] sm:$0xff]
        %v756 = vld [vmem:[#allocation3 + $0x68] sm:$0xff]
        %v757 = vld [vmem:[#allocation3 + $0x70] sm:$0xff]
        %v758 = vld [vmem:[#allocation3 + $0x78] sm:$0xff]
        %759 = vmatprep.subr.bf16.mxu0 0
        %760 = vmatpush1.bf16.msra.mxu0 %v723
        %761 = vmatprep.subr.bf16.mxu0 0
        %762 = vmatpush1.bf16.msra.mxu0 %v724
        %763 = vmatprep.subr.bf16.mxu0 0
        %764 = vmatpush1.bf16.msra.mxu0 %v725
        %765 = vmatprep.subr.bf16.mxu0 0
        %766 = vmatpush1.bf16.msra.mxu0 %v726
        %767 = vmatprep.subr.bf16.mxu0 0
        %768 = vmatpush1.bf16.msra.mxu0 %v727
        %769 = vmatprep.subr.bf16.mxu0 0
        %770 = vmatpush1.bf16.msra.mxu0 %v728
        %771 = vmatprep.subr.bf16.mxu0 0
        %772 = vmatpush1.bf16.msra.mxu0 %v729
        %773 = vmatprep.subr.bf16.mxu0 0
        %774 = vmatpush1.bf16.msra.mxu0 %v730
        %775 = vmatprep.subr.bf16.mxu0 0
        %776 = vmatpush1.bf16.msra.mxu0 0
        %777 = vmatprep.subr.bf16.mxu0 0
        %778 = vmatpush1.bf16.msra.mxu0 0
        %779 = vmatprep.subr.bf16.mxu0 0
        %780 = vmatpush1.bf16.msra.mxu0 0
        %781 = vmatprep.subr.bf16.mxu0 0
        %782 = vmatpush1.bf16.msra.mxu0 0
        %783 = vmatprep.subr.bf16.mxu0 0
        %784 = vmatpush1.bf16.msra.mxu0 0
        %785 = vmatprep.subr.bf16.mxu0 0
        %786 = vmatpush1.bf16.msra.mxu0 0
        %787 = vmatprep.subr.bf16.mxu0 0
        %788 = vmatpush1.bf16.msra.mxu0 0
        %789 = vmatprep.subr.bf16.mxu0 0
        %790 = vmatpush1.bf16.msra.mxu0 0
        %791 = vmatprep.mubr.bf16.mxu0 0
        %792 = vmatmul.mubr.bf16.gmra.mrb[0].mxu0 %v735
        %v793 = vpop.f32.mrb[0].mxu0
        %v794 = vadd.f32 0.0, %v793
        %v795 = vpop.f32.mrb[0].mxu0
        %v796 = vpop.f32.mrb[0].mxu0
        %v797 = vadd.f32 0.0, %v796
        %v798 = vpop.f32.mrb[0].mxu0
        %799 = vmatprep.mubr.bf16.mxu0 0
        %800 = vmatmul.mubr.bf16.gmra.mrb[0].mxu0 %v736
        %v801 = vpop.f32.mrb[0].mxu0
        %v802 = vadd.f32 0.0, %v801
        %v803 = vpop.f32.mrb[0].mxu0
        %v804 = vpop.f32.mrb[0].mxu0
        %v805 = vadd.f32 0.0, %v804
        %v806 = vpop.f32.mrb[0].mxu0
        %807 = vmatprep.mubr.bf16.mxu0 0
        %808 = vmatmul.mubr.bf16.gmra.mrb[0].mxu0 %v737
        %v809 = vpop.f32.mrb[0].mxu0
        %v810 = vadd.f32 0.0, %v809
        %v811 = vpop.f32.mrb[0].mxu0
        %v812 = vpop.f32.mrb[0].mxu0
        %v813 = vadd.f32 0.0, %v812
        %v814 = vpop.f32.mrb[0].mxu0
        %815 = vmatprep.mubr.bf16.mxu0 0
        %816 = vmatmul.mubr.bf16.gmra.mrb[0].mxu0 %v738
        %v817 = vpop.f32.mrb[0].mxu0
        %v818 = vadd.f32 0.0, %v817
        %v819 = vpop.f32.mrb[0].mxu0
        %v820 = vpop.f32.mrb[0].mxu0
        %v821 = vadd.f32 0.0, %v820
        %v822 = vpop.f32.mrb[0].mxu0
        %823 = vmatprep.mubr.bf16.mxu0 0
        %824 = vmatmul.mubr.bf16.gmra.mrb[0].mxu0 %v739
        %v825 = vpop.f32.mrb[0].mxu0
        %v826 = vadd.f32 0.0, %v825
        %v827 = vpop.f32.mrb[0].mxu0
        %v828 = vpop.f32.mrb[0].mxu0
        %v829 = vadd.f32 0.0, %v828
        %v830 = vpop.f32.mrb[0].mxu0
        %831 = vmatprep.mubr.bf16.mxu0 0
        %832 = vmatmul.mubr.bf16.gmra.mrb[0].mxu0 %v740
        %v833 = vpop.f32.mrb[0].mxu0
        %v834 = vadd.f32 0.0, %v833
        %v835 = vpop.f32.mrb[0].mxu0
        %v836 = vpop.f32.mrb[0].mxu0
        %v837 = vadd.f32 0.0, %v836
        %v838 = vpop.f32.mrb[0].mxu0
        %839 = vmatprep.mubr.bf16.mxu0 0
        %840 = vmatmul.mubr.bf16.gmra.mrb[0].mxu0 %v741
        %v841 = vpop.f32.mrb[0].mxu0
        %v842 = vadd.f32 0.0, %v841
        %v843 = vpop.f32.mrb[0].mxu0
        %v844 = vpop.f32.mrb[0].mxu0
        %v845 = vadd.f32 0.0, %v844
        %v846 = vpop.f32.mrb[0].mxu0
        %847 = vmatprep.mubr.bf16.mxu0 0
        %848 = vmatmul.mubr.bf16.gmra.mrb[0].mxu0 %v742
        %v849 = vpop.f32.mrb[0].mxu0
        %v850 = vadd.f32 0.0, %v849
        %v851 = vpop.f32.mrb[0].mxu0
        %v852 = vpop.f32.mrb[0].mxu0
        %v853 = vadd.f32 0.0, %v852
        %v854 = vpop.f32.mrb[0].mxu0
        %855 = vdwg.mxu0
        %v856 = vadd.f32 %v743, %v794
        %v857 = vadd.f32 %v744, %v797
        %v858 = vadd.f32 %v745, %v802
        %v859 = vadd.f32 %v746, %v805
        %v860 = vadd.f32 %v747, %v810
        %v861 = vadd.f32 %v748, %v813
        %v862 = vadd.f32 %v749, %v818
        %v863 = vadd.f32 %v750, %v821
        %v864 = vadd.f32 %v751, %v826
        %v865 = vadd.f32 %v752, %v829
        %v866 = vadd.f32 %v753, %v834
        %v867 = vadd.f32 %v754, %v837
        %v868 = vadd.f32 %v755, %v842
        %v869 = vadd.f32 %v756, %v845
        %v870 = vadd.f32 %v757, %v850
        %v871 = vadd.f32 %v758, %v853
        %872 = vst [vmem:[#allocation3] sm:$0xff] %v856
        %873 = vst [vmem:[#allocation3 + $0x8] sm:$0xff] %v857
        %874 = vst [vmem:[#allocation3 + $0x10] sm:$0xff] %v858
        %875 = vst [vmem:[#allocation3 + $0x18] sm:$0xff] %v859
        %876 = vst [vmem:[#allocation3 + $0x20] sm:$0xff] %v860
        %877 = vst [vmem:[#allocation3 + $0x28] sm:$0xff] %v861
        %878 = vst [vmem:[#allocation3 + $0x30] sm:$0xff] %v862
        %879 = vst [vmem:[#allocation3 + $0x38] sm:$0xff] %v863
        %880 = vst [vmem:[#allocation3 + $0x40] sm:$0xff] %v864
        %881 = vst [vmem:[#allocation3 + $0x48] sm:$0xff] %v865
        %882 = vst [vmem:[#allocation3 + $0x50] sm:$0xff] %v866
        %883 = vst [vmem:[#allocation3 + $0x58] sm:$0xff] %v867
        %884 = vst [vmem:[#allocation3 + $0x60] sm:$0xff] %v868
        %885 = vst [vmem:[#allocation3 + $0x68] sm:$0xff] %v869
        %886 = vst [vmem:[#allocation3 + $0x70] sm:$0xff] %v870
        %887 = vst [vmem:[#allocation3 + $0x78] sm:$0xff] %v871
        // Predicated region
        $region97: #{tpu_custom_call.1} parent=59 // pred_check
          %p888 = pneg %p586
        $region98: #{tpu_custom_call.1} parent=59 // pred_check_branch
          %890 = sbr.rel (%p888) target = $region100
        $region99: #{tpu_custom_call.1} parent=59 // pred_region
          %s891 = smul.u32 %s33, 128
          %s892 = sshra.s32 %s891, 4
          %s893 = sand.u32 %s891, 15
          %s894 = sadd.s32 %s892, %s719
          %s895 = smul.addr %s894, 8
          %s896 = scalar_lea.vmem [#allocation2], %s895
          %v897 = vld [vmem:[%s896] sm:$0xff]
          %v898 = vld [vmem:[%s896 + $0x8] sm:$0xff]
          %v899 = vld [vmem:[%s896 + $0x10] sm:$0xff]
          %v900 = vld [vmem:[%s896 + $0x18] sm:$0xff]
          %v901 = vld [vmem:[%s896 + $0x20] sm:$0xff]
          %v902 = vld [vmem:[%s896 + $0x28] sm:$0xff]
          %v903 = vld [vmem:[%s896 + $0x30] sm:$0xff]
          %v904 = vld [vmem:[%s896 + $0x38] sm:$0xff]
          %v905 = vld [vmem:[#allocation3] sm:$0xff]
          %v906 = vld [vmem:[#allocation3 + $0x8] sm:$0xff]
          %v907 = vld [vmem:[#allocation3 + $0x10] sm:$0xff]
          %v908 = vld [vmem:[#allocation3 + $0x18] sm:$0xff]
          %v909 = vld [vmem:[#allocation3 + $0x20] sm:$0xff]
          %v910 = vld [vmem:[#allocation3 + $0x28] sm:$0xff]
          %v911 = vld [vmem:[#allocation3 + $0x30] sm:$0xff]
          %v912 = vld [vmem:[#allocation3 + $0x38] sm:$0xff]
          %v913 = vld [vmem:[#allocation3 + $0x40] sm:$0xff]
          %v914 = vld [vmem:[#allocation3 + $0x48] sm:$0xff]
          %v915 = vld [vmem:[#allocation3 + $0x50] sm:$0xff]
          %v916 = vld [vmem:[#allocation3 + $0x58] sm:$0xff]
          %v917 = vld [vmem:[#allocation3 + $0x60] sm:$0xff]
          %v918 = vld [vmem:[#allocation3 + $0x68] sm:$0xff]
          %v919 = vld [vmem:[#allocation3 + $0x70] sm:$0xff]
          %v920 = vld [vmem:[#allocation3 + $0x78] sm:$0xff]
          %v921 = vpack.c.bf16 %v906, %v905
          %v922 = vpack.c.bf16 %v908, %v907
          %v923 = vpack.c.bf16 %v910, %v909
          %v924 = vpack.c.bf16 %v912, %v911
          %v925 = vpack.c.bf16 %v914, %v913
          %v926 = vpack.c.bf16 %v916, %v915
          %v927 = vpack.c.bf16 %v918, %v917
          %v928 = vpack.c.bf16 %v920, %v919
          %v929 = vld [vmem:[%s495] sm:$0xf]
          %v930 = vld [vmem:[%s495 + $0x4] sm:$0xf]
          %v931 = vld [vmem:[%s495 + $0x8] sm:$0xf]
          %v932 = vld [vmem:[%s495 + $0xc] sm:$0xf]
          %v933 = vld [vmem:[%s495 + $0x10] sm:$0xf]
          %v934 = vld [vmem:[%s495 + $0x14] sm:$0xf]
          %v935 = vld [vmem:[%s495 + $0x18] sm:$0xf]
          %v936 = vld [vmem:[%s495 + $0x1c] sm:$0xf]
          %v937 = vld [vmem:[%s495 + $0x20] sm:$0xf]
          %v938 = vld [vmem:[%s495 + $0x24] sm:$0xf]
          %v939 = vld [vmem:[%s495 + $0x28] sm:$0xf]
          %v940 = vld [vmem:[%s495 + $0x2c] sm:$0xf]
          %v941 = vld [vmem:[%s495 + $0x30] sm:$0xf]
          %v942 = vld [vmem:[%s495 + $0x34] sm:$0xf]
          %v943 = vld [vmem:[%s495 + $0x38] sm:$0xf]
          %v944 = vld [vmem:[%s495 + $0x3c] sm:$0xf]
          %v945 = vld [vmem:[%s504] sm:$0xf]
          %v946 = vld [vmem:[%s504 + $0x4] sm:$0xf]
          %v947 = vld [vmem:[%s504 + $0x8] sm:$0xf]
          %v948 = vld [vmem:[%s504 + $0xc] sm:$0xf]
          %v949 = vld [vmem:[%s504 + $0x10] sm:$0xf]
          %v950 = vld [vmem:[%s504 + $0x14] sm:$0xf]
          %v951 = vld [vmem:[%s504 + $0x18] sm:$0xf]
          %v952 = vld [vmem:[%s504 + $0x1c] sm:$0xf]
          %v953 = vld [vmem:[%s504 + $0x20] sm:$0xf]
          %v954 = vld [vmem:[%s504 + $0x24] sm:$0xf]
          %v955 = vld [vmem:[%s504 + $0x28] sm:$0xf]
          %v956 = vld [vmem:[%s504 + $0x2c] sm:$0xf]
          %v957 = vld [vmem:[%s504 + $0x30] sm:$0xf]
          %v958 = vld [vmem:[%s504 + $0x34] sm:$0xf]
          %v959 = vld [vmem:[%s504 + $0x38] sm:$0xf]
          %v960 = vld [vmem:[%s504 + $0x3c] sm:$0xf]
          %v977 = vunpack.c.l.b16 %v945
          %v978 = vunpack.c.l.b16 %v946
          %v979 = vunpack.c.l.b16 %v947
          %v980 = vunpack.c.l.b16 %v948
          %v981 = vunpack.c.l.b16 %v949
          %v982 = vunpack.c.l.b16 %v950
          %v983 = vunpack.c.l.b16 %v951
          %v984 = vunpack.c.l.b16 %v952
          %v985 = vunpack.c.l.b16 %v953
          %v986 = vunpack.c.l.b16 %v954
          %v987 = vunpack.c.l.b16 %v955
          %v988 = vunpack.c.l.b16 %v956
          %v989 = vunpack.c.l.b16 %v957
          %v990 = vunpack.c.l.b16 %v958
          %v991 = vunpack.c.l.b16 %v959
          %v992 = vunpack.c.l.b16 %v960
          %v993 = vpack.c.b16 %v978, %v977
          %v994 = vpack.c.b16 %v980, %v979
          %v995 = vpack.c.b16 %v982, %v981
          %v996 = vpack.c.b16 %v984, %v983
          %v997 = vpack.c.b16 %v986, %v985
          %v998 = vpack.c.b16 %v988, %v987
          %v999 = vpack.c.b16 %v990, %v989
          %v1000 = vpack.c.b16 %v992, %v991
          %1009 = vmatprep.subr.bf16.mxu0 0
          %1010 = vmatpush1.bf16.msra.mxu0 %v993
          %1011 = vmatprep.subr.bf16.mxu0 0
          %1012 = vmatpush1.bf16.msra.mxu0 %v994
          %1013 = vmatprep.subr.bf16.mxu0 0
          %1014 = vmatpush1.bf16.msra.mxu0 %v995
          %1015 = vmatprep.subr.bf16.mxu0 0
          %1016 = vmatpush1.bf16.msra.mxu0 %v996
          %1017 = vmatprep.subr.bf16.mxu0 0
          %1018 = vmatpush1.bf16.msra.mxu0 %v997
          %1019 = vmatprep.subr.bf16.mxu0 0
          %1020 = vmatpush1.bf16.msra.mxu0 %v998
          %1021 = vmatprep.subr.bf16.mxu0 0
          %1022 = vmatpush1.bf16.msra.mxu0 %v999
          %1023 = vmatprep.subr.bf16.mxu0 0
          %1024 = vmatpush1.bf16.msra.mxu0 %v1000
          %1025 = vmatprep.subr.bf16.mxu0 0
          %1026 = vmatpush1.bf16.msra.mxu0 0
          %1027 = vmatprep.subr.bf16.mxu0 0
          %1028 = vmatpush1.bf16.msra.mxu0 0
          %1029 = vmatprep.subr.bf16.mxu0 0
          %1030 = vmatpush1.bf16.msra.mxu0 0
          %1031 = vmatprep.subr.bf16.mxu0 0
          %1032 = vmatpush1.bf16.msra.mxu0 0
          %1033 = vmatprep.subr.bf16.mxu0 0
          %1034 = vmatpush1.bf16.msra.mxu0 0
          %1035 = vmatprep.subr.bf16.mxu0 0
          %1036 = vmatpush1.bf16.msra.mxu0 0
          %1037 = vmatprep.subr.bf16.mxu0 0
          %1038 = vmatpush1.bf16.msra.mxu0 0
          %1039 = vmatprep.subr.bf16.mxu0 0
          %1040 = vmatpush1.bf16.msra.mxu0 0
          %1041 = vmatprep.mubr.bf16.mxu0 0
          %1042 = vmatmul.mubr.bf16.gmra.mrb[0].mxu0 %v897
          %v1043 = vpop.f32.mrb[0].mxu0
          %v1044 = vadd.f32 0.0, %v1043
          %v1045 = vpop.f32.mrb[0].mxu0
          %v1046 = vpop.f32.mrb[0].mxu0
          %v1047 = vadd.f32 0.0, %v1046
          %v1048 = vpop.f32.mrb[0].mxu0
          %1049 = vmatprep.mubr.bf16.mxu0 0
          %1050 = vmatmul.mubr.bf16.gmra.mrb[0].mxu0 %v898
          %v1051 = vpop.f32.mrb[0].mxu0
          %v1052 = vadd.f32 0.0, %v1051
          %v1053 = vpop.f32.mrb[0].mxu0
          %v1054 = vpop.f32.mrb[0].mxu0
          %v1055 = vadd.f32 0.0, %v1054
          %v1056 = vpop.f32.mrb[0].mxu0
          %1057 = vmatprep.mubr.bf16.mxu0 0
          %1058 = vmatmul.mubr.bf16.gmra.mrb[0].mxu0 %v899
          %v1059 = vpop.f32.mrb[0].mxu0
          %v1060 = vadd.f32 0.0, %v1059
          %v1061 = vpop.f32.mrb[0].mxu0
          %v1062 = vpop.f32.mrb[0].mxu0
          %v1063 = vadd.f32 0.0, %v1062
          %v1064 = vpop.f32.mrb[0].mxu0
          %1065 = vmatprep.mubr.bf16.mxu0 0
          %1066 = vmatmul.mubr.bf16.gmra.mrb[0].mxu0 %v900
          %v1067 = vpop.f32.mrb[0].mxu0
          %v1068 = vadd.f32 0.0, %v1067
          %v1069 = vpop.f32.mrb[0].mxu0
          %v1070 = vpop.f32.mrb[0].mxu0
          %v1071 = vadd.f32 0.0, %v1070
          %v1072 = vpop.f32.mrb[0].mxu0
          %1073 = vmatprep.mubr.bf16.mxu0 0
          %1074 = vmatmul.mubr.bf16.gmra.mrb[0].mxu0 %v901
          %v1075 = vpop.f32.mrb[0].mxu0
          %v1076 = vadd.f32 0.0, %v1075
          %v1077 = vpop.f32.mrb[0].mxu0
          %v1078 = vpop.f32.mrb[0].mxu0
          %v1079 = vadd.f32 0.0, %v1078
          %v1080 = vpop.f32.mrb[0].mxu0
          %1081 = vmatprep.mubr.bf16.mxu0 0
          %1082 = vmatmul.mubr.bf16.gmra.mrb[0].mxu0 %v902
          %v1083 = vpop.f32.mrb[0].mxu0
          %v1084 = vadd.f32 0.0, %v1083
          %v1085 = vpop.f32.mrb[0].mxu0
          %v1086 = vpop.f32.mrb[0].mxu0
          %v1087 = vadd.f32 0.0, %v1086
          %v1088 = vpop.f32.mrb[0].mxu0
          %1089 = vmatprep.mubr.bf16.mxu0 0
          %1090 = vmatmul.mubr.bf16.gmra.mrb[0].mxu0 %v903
          %v1091 = vpop.f32.mrb[0].mxu0
          %v1092 = vadd.f32 0.0, %v1091
          %v1093 = vpop.f32.mrb[0].mxu0
          %v1094 = vpop.f32.mrb[0].mxu0
          %v1095 = vadd.f32 0.0, %v1094
          %v1096 = vpop.f32.mrb[0].mxu0
          %1097 = vmatprep.mubr.bf16.mxu0 0
          %1098 = vmatmul.mubr.bf16.gmra.mrb[0].mxu0 %v904
          %v1099 = vpop.f32.mrb[0].mxu0
          %v1100 = vadd.f32 0.0, %v1099
          %v1101 = vpop.f32.mrb[0].mxu0
          %v1102 = vpop.f32.mrb[0].mxu0
          %v1103 = vadd.f32 0.0, %v1102
          %v1104 = vpop.f32.mrb[0].mxu0
          %1105 = vdwg.mxu0
          %v1122 = vunpack.c.l.b16 %v929
          %v1123 = vunpack.c.l.b16 %v930
          %v1124 = vunpack.c.l.b16 %v931
          %v1125 = vunpack.c.l.b16 %v932
          %v1126 = vunpack.c.l.b16 %v933
          %v1127 = vunpack.c.l.b16 %v934
          %v1128 = vunpack.c.l.b16 %v935
          %v1129 = vunpack.c.l.b16 %v936
          %v1130 = vunpack.c.l.b16 %v937
          %v1131 = vunpack.c.l.b16 %v938
          %v1132 = vunpack.c.l.b16 %v939
          %v1133 = vunpack.c.l.b16 %v940
          %v1134 = vunpack.c.l.b16 %v941
          %v1135 = vunpack.c.l.b16 %v942
          %v1136 = vunpack.c.l.b16 %v943
          %v1137 = vunpack.c.l.b16 %v944
          %v1138 = vpack.c.b16 %v1123, %v1122
          %v1139 = vpack.c.b16 %v1125, %v1124
          %v1140 = vpack.c.b16 %v1127, %v1126
          %v1141 = vpack.c.b16 %v1129, %v1128
          %v1142 = vpack.c.b16 %v1131, %v1130
          %v1143 = vpack.c.b16 %v1133, %v1132
          %v1144 = vpack.c.b16 %v1135, %v1134
          %v1145 = vpack.c.b16 %v1137, %v1136
          %1154 = vmatprep.subr.bf16.mxu0 0
          %1155 = vmatpush1.bf16.msra.mxu0 %v1138
          %1156 = vmatprep.subr.bf16.mxu0 0
          %1157 = vmatpush1.bf16.msra.mxu0 %v1139
          %1158 = vmatprep.subr.bf16.mxu0 0
          %1159 = vmatpush1.bf16.msra.mxu0 %v1140
          %1160 = vmatprep.subr.bf16.mxu0 0
          %1161 = vmatpush1.bf16.msra.mxu0 %v1141
          %1162 = vmatprep.subr.bf16.mxu0 0
          %1163 = vmatpush1.bf16.msra.mxu0 %v1142
          %1164 = vmatprep.subr.bf16.mxu0 0
          %1165 = vmatpush1.bf16.msra.mxu0 %v1143
          %1166 = vmatprep.subr.bf16.mxu0 0
          %1167 = vmatpush1.bf16.msra.mxu0 %v1144
          %1168 = vmatprep.subr.bf16.mxu0 0
          %1169 = vmatpush1.bf16.msra.mxu0 %v1145
          %1170 = vmatprep.subr.bf16.mxu0 0
          %1171 = vmatpush1.bf16.msra.mxu0 0
          %1172 = vmatprep.subr.bf16.mxu0 0
          %1173 = vmatpush1.bf16.msra.mxu0 0
          %1174 = vmatprep.subr.bf16.mxu0 0
          %1175 = vmatpush1.bf16.msra.mxu0 0
          %1176 = vmatprep.subr.bf16.mxu0 0
          %1177 = vmatpush1.bf16.msra.mxu0 0
          %1178 = vmatprep.subr.bf16.mxu0 0
          %1179 = vmatpush1.bf16.msra.mxu0 0
          %1180 = vmatprep.subr.bf16.mxu0 0
          %1181 = vmatpush1.bf16.msra.mxu0 0
          %1182 = vmatprep.subr.bf16.mxu0 0
          %1183 = vmatpush1.bf16.msra.mxu0 0
          %1184 = vmatprep.subr.bf16.mxu0 0
          %1185 = vmatpush1.bf16.msra.mxu0 0
          %1186 = vmatprep.mubr.bf16.mxu0 0
          %1187 = vmatmul.mubr.bf16.gmra.mrb[0].mxu0 %v921
          %v1188 = vpop.f32.mrb[0].mxu0
          %v1189 = vadd.f32 %v1044, %v1188
          %v1190 = vpop.f32.mrb[0].mxu0
          %v1191 = vpop.f32.mrb[0].mxu0
          %v1192 = vadd.f32 %v1047, %v1191
          %v1193 = vpop.f32.mrb[0].mxu0
          %1194 = vmatprep.mubr.bf16.mxu0 0
          %1195 = vmatmul.mubr.bf16.gmra.mrb[0].mxu0 %v922
          %v1196 = vpop.f32.mrb[0].mxu0
          %v1197 = vadd.f32 %v1052, %v1196
          %v1198 = vpop.f32.mrb[0].mxu0
          %v1199 = vpop.f32.mrb[0].mxu0
          %v1200 = vadd.f32 %v1055, %v1199
          %v1201 = vpop.f32.mrb[0].mxu0
          %1202 = vmatprep.mubr.bf16.mxu0 0
          %1203 = vmatmul.mubr.bf16.gmra.mrb[0].mxu0 %v923
          %v1204 = vpop.f32.mrb[0].mxu0
          %v1205 = vadd.f32 %v1060, %v1204
          %v1206 = vpop.f32.mrb[0].mxu0
          %v1207 = vpop.f32.mrb[0].mxu0
          %v1208 = vadd.f32 %v1063, %v1207
          %v1209 = vpop.f32.mrb[0].mxu0
          %1210 = vmatprep.mubr.bf16.mxu0 0
          %1211 = vmatmul.mubr.bf16.gmra.mrb[0].mxu0 %v924
          %v1212 = vpop.f32.mrb[0].mxu0
          %v1213 = vadd.f32 %v1068, %v1212
          %v1214 = vpop.f32.mrb[0].mxu0
          %v1215 = vpop.f32.mrb[0].mxu0
          %v1216 = vadd.f32 %v1071, %v1215
          %v1217 = vpop.f32.mrb[0].mxu0
          %1218 = vmatprep.mubr.bf16.mxu0 0
          %1219 = vmatmul.mubr.bf16.gmra.mrb[0].mxu0 %v925
          %v1220 = vpop.f32.mrb[0].mxu0
          %v1221 = vadd.f32 %v1076, %v1220
          %v1222 = vpop.f32.mrb[0].mxu0
          %v1223 = vpop.f32.mrb[0].mxu0
          %v1224 = vadd.f32 %v1079, %v1223
          %v1225 = vpop.f32.mrb[0].mxu0
          %1226 = vmatprep.mubr.bf16.mxu0 0
          %1227 = vmatmul.mubr.bf16.gmra.mrb[0].mxu0 %v926
          %v1228 = vpop.f32.mrb[0].mxu0
          %v1229 = vadd.f32 %v1084, %v1228
          %v1230 = vpop.f32.mrb[0].mxu0
          %v1231 = vpop.f32.mrb[0].mxu0
          %v1232 = vadd.f32 %v1087, %v1231
          %v1233 = vpop.f32.mrb[0].mxu0
          %1234 = vmatprep.mubr.bf16.mxu0 0
          %1235 = vmatmul.mubr.bf16.gmra.mrb[0].mxu0 %v927
          %v1236 = vpop.f32.mrb[0].mxu0
          %v1237 = vadd.f32 %v1092, %v1236
          %v1238 = vpop.f32.mrb[0].mxu0
          %v1239 = vpop.f32.mrb[0].mxu0
          %v1240 = vadd.f32 %v1095, %v1239
          %v1241 = vpop.f32.mrb[0].mxu0
          %1242 = vmatprep.mubr.bf16.mxu0 0
          %1243 = vmatmul.mubr.bf16.gmra.mrb[0].mxu0 %v928
          %v1244 = vpop.f32.mrb[0].mxu0
          %v1245 = vadd.f32 %v1100, %v1244
          %v1246 = vpop.f32.mrb[0].mxu0
          %v1247 = vpop.f32.mrb[0].mxu0
          %v1248 = vadd.f32 %v1103, %v1247
          %v1249 = vpop.f32.mrb[0].mxu0
          %1250 = vdwg.mxu0
          %v1251 = vld [vmem:[%s580] sm:$0x1]
          %v1253 = vlaneseq
          %v1254 = vshrl.u32 %v1253, 7
          %v1255 = vsub.s32 0, %v1254
          %v1256 = vrot.slane %v1251, %v1255
          %v1258 = vadd.f32 %v1189, %v1256
          %v1259 = vadd.f32 %v1192, %v1256
          %v1260 = vadd.f32 %v1197, %v1256
          %v1261 = vadd.f32 %v1200, %v1256
          %v1262 = vadd.f32 %v1205, %v1256
          %v1263 = vadd.f32 %v1208, %v1256
          %v1264 = vadd.f32 %v1213, %v1256
          %v1265 = vadd.f32 %v1216, %v1256
          %v1266 = vadd.f32 %v1221, %v1256
          %v1267 = vadd.f32 %v1224, %v1256
          %v1268 = vadd.f32 %v1229, %v1256
          %v1269 = vadd.f32 %v1232, %v1256
          %v1270 = vadd.f32 %v1237, %v1256
          %v1271 = vadd.f32 %v1240, %v1256
          %v1272 = vadd.f32 %v1245, %v1256
          %v1273 = vadd.f32 %v1248, %v1256
          %v1274 = vmax.f32 %v1258, 0.0
          %v1275 = vmax.f32 %v1259, 0.0
          %v1276 = vmax.f32 %v1260, 0.0
          %v1277 = vmax.f32 %v1261, 0.0
          %v1278 = vmax.f32 %v1262, 0.0
          %v1279 = vmax.f32 %v1263, 0.0
          %v1280 = vmax.f32 %v1264, 0.0
          %v1281 = vmax.f32 %v1265, 0.0
          %v1282 = vmax.f32 %v1266, 0.0
          %v1283 = vmax.f32 %v1267, 0.0
          %v1284 = vmax.f32 %v1268, 0.0
          %v1285 = vmax.f32 %v1269, 0.0
          %v1286 = vmax.f32 %v1270, 0.0
          %v1287 = vmax.f32 %v1271, 0.0
          %v1288 = vmax.f32 %v1272, 0.0
          %v1289 = vmax.f32 %v1273, 0.0
          %v1290 = vpack.c.bf16 %v1275, %v1274
          %v1291 = vpack.c.bf16 %v1277, %v1276
          %v1292 = vpack.c.bf16 %v1279, %v1278
          %v1293 = vpack.c.bf16 %v1281, %v1280
          %v1294 = vpack.c.bf16 %v1283, %v1282
          %v1295 = vpack.c.bf16 %v1285, %v1284
          %v1296 = vpack.c.bf16 %v1287, %v1286
          %v1297 = vpack.c.bf16 %v1289, %v1288
          %s1298 = smul.u32 %s696, 8
          %s1299 = sadd.s32 %s892, %s1298
          %s1300 = smul.addr %s1299, 8
          %s1301 = scalar_lea.vmem [#allocation2], %s1300
          %1302 = vst [vmem:[%s1301] sm:$0xff] %v1290
          %1303 = vst [vmem:[%s1301 + $0x8] sm:$0xff] %v1291
          %1304 = vst [vmem:[%s1301 + $0x10] sm:$0xff] %v1292
          %1305 = vst [vmem:[%s1301 + $0x18] sm:$0xff] %v1293
          %1306 = vst [vmem:[%s1301 + $0x20] sm:$0xff] %v1294
          %1307 = vst [vmem:[%s1301 + $0x28] sm:$0xff] %v1295
          %1308 = vst [vmem:[%s1301 + $0x30] sm:$0xff] %v1296
          %1309 = vst [vmem:[%s1301 + $0x38] sm:$0xff] %v1297
        $region100: #{tpu_custom_call.1} parent=59 // pred_fallthru
          _
        %p1310 = scmp.eq.s32.totalorder %s32, 1
        %p1311 = pnand %p1310, %p586
        %p1312 = pneg %p1311
        // Predicated region
        $region101: #{tpu_custom_call.1} parent=59 // pred_check
          _
        $region102: #{tpu_custom_call.1} parent=59 // pred_check_branch
          %1314 = sbr.rel (%p1311) target = $region104
        $region103: #{tpu_custom_call.1} parent=59 // pred_region
          %s1315 = smul.u32 %s33, 128
          %s1316 = sshra.s32 %s1315, 4
          %s1317 = sand.u32 %s1315, 15
          %s1318 = smul.u32 %s696, 8
          %s1319 = sadd.s32 %s1316, %s1318
          %s1320 = smul.addr %s1319, 8
          %s1321 = scalar_lea.vmem [#allocation2], %s1320
          %v1322 = vld [vmem:[%s1321] sm:$0xff]
          %v1323 = vld [vmem:[%s1321 + $0x8] sm:$0xff]
          %v1324 = vld [vmem:[%s1321 + $0x10] sm:$0xff]
          %v1325 = vld [vmem:[%s1321 + $0x18] sm:$0xff]
          %v1326 = vld [vmem:[%s1321 + $0x20] sm:$0xff]
          %v1327 = vld [vmem:[%s1321 + $0x28] sm:$0xff]
          %v1328 = vld [vmem:[%s1321 + $0x30] sm:$0xff]
          %v1329 = vld [vmem:[%s1321 + $0x38] sm:$0xff]
          %v1330 = vld [vmem:[#allocation4] sm:$0xff]
          %v1331 = vld [vmem:[%s575] sm:$0xf]
          %1332 = vmatprep.subr.bf16.mxu0 0
          %1333 = vmatpush1.bf16.msra.mxu0 %v1322
          %1334 = vmatprep.subr.bf16.mxu0 0
          %1335 = vmatpush1.bf16.msra.mxu0 %v1323
          %1336 = vmatprep.subr.bf16.mxu0 0
          %1337 = vmatpush1.bf16.msra.mxu0 %v1324
          %1338 = vmatprep.subr.bf16.mxu0 0
          %1339 = vmatpush1.bf16.msra.mxu0 %v1325
          %1340 = vmatprep.subr.bf16.mxu0 0
          %1341 = vmatpush1.bf16.msra.mxu0 %v1326
          %1342 = vmatprep.subr.bf16.mxu0 0
          %1343 = vmatpush1.bf16.msra.mxu0 %v1327
          %1344 = vmatprep.subr.bf16.mxu0 0
          %1345 = vmatpush1.bf16.msra.mxu0 %v1328
          %1346 = vmatprep.subr.bf16.mxu0 0
          %1347 = vmatpush1.bf16.msra.mxu0 %v1329
          %1348 = vmatprep.subr.bf16.mxu0 0
          %1349 = vmatpush1.bf16.msra.mxu0 0
          %1350 = vmatprep.subr.bf16.mxu0 0
          %1351 = vmatpush1.bf16.msra.mxu0 0
          %1352 = vmatprep.subr.bf16.mxu0 0
          %1353 = vmatpush1.bf16.msra.mxu0 0
          %1354 = vmatprep.subr.bf16.mxu0 0
          %1355 = vmatpush1.bf16.msra.mxu0 0
          %1356 = vmatprep.subr.bf16.mxu0 0
          %1357 = vmatpush1.bf16.msra.mxu0 0
          %1358 = vmatprep.subr.bf16.mxu0 0
          %1359 = vmatpush1.bf16.msra.mxu0 0
          %1360 = vmatprep.subr.bf16.mxu0 0
          %1361 = vmatpush1.bf16.msra.mxu0 0
          %1362 = vmatprep.subr.bf16.mxu0 0
          %1363 = vmatpush1.bf16.msra.mxu0 0
          %1364 = vmatprep.mubr.bf16.mxu0 0
          %1365 = vmatmul.mubr.bf16.gmra.mrb[0].mxu0 %v1331
          %v1366 = vpop.f32.mrb[0].mxu0
          %v1367 = vadd.f32 0.0, %v1366
          %v1368 = vpop.f32.mrb[0].mxu0
          %v1369 = vpop.f32.mrb[0].mxu0
          %v1370 = vpop.f32.mrb[0].mxu0
          %1371 = vdwg.mxu0
          %v1372 = vadd.f32 %v1330, %v1367
          %1373 = vst [vmem:[#allocation4] sm:$0xff] %v1372
        $region104: #{tpu_custom_call.1} parent=59 // pred_fallthru
          _
        %p1374 = pnand %p1310, %p583
        %p1375 = pneg %p1374
        %p1376 = pnand %p1375, %p586
        %p1377 = pneg %p1376
        // Predicated region
        $region105: #{tpu_custom_call.1} parent=59 // pred_check
          _
        $region106: #{tpu_custom_call.1} parent=59 // pred_check_branch
          %1379 = sbr.rel (%p1376) target = $region108
        $region107: #{tpu_custom_call.1} parent=59 // pred_region
          %v1380 = vld [vmem:[#allocation4] sm:$0xff]
          %v1381 = vpack.c.bf16 %v1380, %v1380
          %v1382 = vld [vmem:[#allocation12] sm:$0xf]
          %v1383 = vld [vmem:[#allocation12 + $0x4] sm:$0xf]
          %v1384 = vld [vmem:[#allocation12 + $0x8] sm:$0xf]
          %v1385 = vld [vmem:[#allocation12 + $0xc] sm:$0xf]
          %v1386 = vld [vmem:[#allocation12 + $0x10] sm:$0xf]
          %v1387 = vld [vmem:[#allocation12 + $0x14] sm:$0xf]
          %v1388 = vld [vmem:[#allocation12 + $0x18] sm:$0xf]
          %v1389 = vld [vmem:[#allocation12 + $0x1c] sm:$0xf]
          %v1390 = vld [vmem:[#allocation12 + $0x20] sm:$0xf]
          %v1391 = vld [vmem:[#allocation12 + $0x24] sm:$0xf]
          %v1392 = vld [vmem:[#allocation12 + $0x28] sm:$0xf]
          %v1393 = vld [vmem:[#allocation12 + $0x2c] sm:$0xf]
          %v1394 = vld [vmem:[#allocation12 + $0x30] sm:$0xf]
          %v1395 = vld [vmem:[#allocation12 + $0x34] sm:$0xf]
          %v1396 = vld [vmem:[#allocation12 + $0x38] sm:$0xf]
          %v1397 = vld [vmem:[#allocation12 + $0x3c] sm:$0xf]
          %v1398 = vld [vmem:[%s7] sm:$0x1]
          %v1400 = vlaneseq
          %v1401 = vshrl.u32 %v1400, 7
          %v1402 = vsub.s32 0, %v1401
          %v1403 = vrot.slane %v1398, %v1402
          %v1421 = vunpack.c.l.b16 %v1382
          %v1422 = vunpack.c.l.b16 %v1383
          %v1423 = vunpack.c.l.b16 %v1384
          %v1424 = vunpack.c.l.b16 %v1385
          %v1425 = vunpack.c.l.b16 %v1386
          %v1426 = vunpack.c.l.b16 %v1387
          %v1427 = vunpack.c.l.b16 %v1388
          %v1428 = vunpack.c.l.b16 %v1389
          %v1429 = vunpack.c.l.b16 %v1390
          %v1430 = vunpack.c.l.b16 %v1391
          %v1431 = vunpack.c.l.b16 %v1392
          %v1432 = vunpack.c.l.b16 %v1393
          %v1433 = vunpack.c.l.b16 %v1394
          %v1434 = vunpack.c.l.b16 %v1395
          %v1435 = vunpack.c.l.b16 %v1396
          %v1436 = vunpack.c.l.b16 %v1397
          %v1437 = vpack.c.b16 %v1422, %v1421
          %v1438 = vpack.c.b16 %v1424, %v1423
          %v1439 = vpack.c.b16 %v1426, %v1425
          %v1440 = vpack.c.b16 %v1428, %v1427
          %v1441 = vpack.c.b16 %v1430, %v1429
          %v1442 = vpack.c.b16 %v1432, %v1431
          %v1443 = vpack.c.b16 %v1434, %v1433
          %v1444 = vpack.c.b16 %v1436, %v1435
          %1453 = vmatprep.subr.bf16.mxu0 0
          %1454 = vmatpush1.bf16.msra.mxu0 %v1437
          %1455 = vmatprep.subr.bf16.mxu0 0
          %1456 = vmatpush1.bf16.msra.mxu0 %v1438
          %1457 = vmatprep.subr.bf16.mxu0 0
          %1458 = vmatpush1.bf16.msra.mxu0 %v1439
          %1459 = vmatprep.subr.bf16.mxu0 0
          %1460 = vmatpush1.bf16.msra.mxu0 %v1440
          %1461 = vmatprep.subr.bf16.mxu0 0
          %1462 = vmatpush1.bf16.msra.mxu0 %v1441
          %1463 = vmatprep.subr.bf16.mxu0 0
          %1464 = vmatpush1.bf16.msra.mxu0 %v1442
          %1465 = vmatprep.subr.bf16.mxu0 0
          %1466 = vmatpush1.bf16.msra.mxu0 %v1443
          %1467 = vmatprep.subr.bf16.mxu0 0
          %1468 = vmatpush1.bf16.msra.mxu0 %v1444
          %1469 = vmatprep.subr.bf16.mxu0 0
          %1470 = vmatpush1.bf16.msra.mxu0 0
          %1471 = vmatprep.subr.bf16.mxu0 0
          %1472 = vmatpush1.bf16.msra.mxu0 0
          %1473 = vmatprep.subr.bf16.mxu0 0
          %1474 = vmatpush1.bf16.msra.mxu0 0
          %1475 = vmatprep.subr.bf16.mxu0 0
          %1476 = vmatpush1.bf16.msra.mxu0 0
          %1477 = vmatprep.subr.bf16.mxu0 0
          %1478 = vmatpush1.bf16.msra.mxu0 0
          %1479 = vmatprep.subr.bf16.mxu0 0
          %1480 = vmatpush1.bf16.msra.mxu0 0
          %1481 = vmatprep.subr.bf16.mxu0 0
          %1482 = vmatpush1.bf16.msra.mxu0 0
          %1483 = vmatprep.subr.bf16.mxu0 0
          %1484 = vmatpush1.bf16.msra.mxu0 0
          %1485 = vmatprep.mubr.bf16.mxu0 0
          %1486 = vmatmul.mubr.bf16.gmra.mrb[0].mxu0 %v1381
          %v1487 = vpop.f32.mrb[0].mxu0
          %v1488 = vadd.f32 %v1403, %v1487
          %v1489 = vpop.f32.mrb[0].mxu0
          %v1490 = vpop.f32.mrb[0].mxu0
          %v1491 = vpop.f32.mrb[0].mxu0
          %1492 = vdwg.mxu0
          %v1493 = vmax.f32 %v1488, 0.0
          %v1494 = vpack.c.bf16 %v1493, %v1493
          %v1495 = vld [vmem:[#allocation13] sm:$0xf]
          %v1496 = vld [vmem:[#allocation13 + $0x4] sm:$0xf]
          %v1497 = vld [vmem:[#allocation13 + $0x8] sm:$0xf]
          %v1498 = vld [vmem:[#allocation13 + $0xc] sm:$0xf]
          %v1499 = vld [vmem:[#allocation13 + $0x10] sm:$0xf]
          %v1500 = vld [vmem:[#allocation13 + $0x14] sm:$0xf]
          %v1501 = vld [vmem:[#allocation13 + $0x18] sm:$0xf]
          %v1502 = vld [vmem:[#allocation13 + $0x1c] sm:$0xf]
          %v1503 = vld [vmem:[#allocation13 + $0x20] sm:$0xf]
          %v1504 = vld [vmem:[#allocation13 + $0x24] sm:$0xf]
          %v1505 = vld [vmem:[#allocation13 + $0x28] sm:$0xf]
          %v1506 = vld [vmem:[#allocation13 + $0x2c] sm:$0xf]
          %v1507 = vld [vmem:[#allocation13 + $0x30] sm:$0xf]
          %v1508 = vld [vmem:[#allocation13 + $0x34] sm:$0xf]
          %v1509 = vld [vmem:[#allocation13 + $0x38] sm:$0xf]
          %v1510 = vld [vmem:[#allocation13 + $0x3c] sm:$0xf]
          %v1511 = vld [vmem:[%s9] sm:$0x1]
          %v1513 = vlaneseq
          %v1514 = vshrl.u32 %v1513, 7
          %v1515 = vsub.s32 0, %v1514
          %v1516 = vrot.slane %v1511, %v1515
          %v1534 = vunpack.c.l.b16 %v1495
          %v1535 = vunpack.c.l.b16 %v1496
          %v1536 = vunpack.c.l.b16 %v1497
          %v1537 = vunpack.c.l.b16 %v1498
          %v1538 = vunpack.c.l.b16 %v1499
          %v1539 = vunpack.c.l.b16 %v1500
          %v1540 = vunpack.c.l.b16 %v1501
          %v1541 = vunpack.c.l.b16 %v1502
          %v1542 = vunpack.c.l.b16 %v1503
          %v1543 = vunpack.c.l.b16 %v1504
          %v1544 = vunpack.c.l.b16 %v1505
          %v1545 = vunpack.c.l.b16 %v1506
          %v1546 = vunpack.c.l.b16 %v1507
          %v1547 = vunpack.c.l.b16 %v1508
          %v1548 = vunpack.c.l.b16 %v1509
          %v1549 = vunpack.c.l.b16 %v1510
          %v1550 = vpack.c.b16 %v1535, %v1534
          %v1551 = vpack.c.b16 %v1537, %v1536
          %v1552 = vpack.c.b16 %v1539, %v1538
          %v1553 = vpack.c.b16 %v1541, %v1540
          %v1554 = vpack.c.b16 %v1543, %v1542
          %v1555 = vpack.c.b16 %v1545, %v1544
          %v1556 = vpack.c.b16 %v1547, %v1546
          %v1557 = vpack.c.b16 %v1549, %v1548
          %1566 = vmatprep.subr.bf16.mxu0 0
          %1567 = vmatpush1.bf16.msra.mxu0 %v1550
          %1568 = vmatprep.subr.bf16.mxu0 0
          %1569 = vmatpush1.bf16.msra.mxu0 %v1551
          %1570 = vmatprep.subr.bf16.mxu0 0
          %1571 = vmatpush1.bf16.msra.mxu0 %v1552
          %1572 = vmatprep.subr.bf16.mxu0 0
          %1573 = vmatpush1.bf16.msra.mxu0 %v1553
          %1574 = vmatprep.subr.bf16.mxu0 0
          %1575 = vmatpush1.bf16.msra.mxu0 %v1554
          %1576 = vmatprep.subr.bf16.mxu0 0
          %1577 = vmatpush1.bf16.msra.mxu0 %v1555
          %1578 = vmatprep.subr.bf16.mxu0 0
          %1579 = vmatpush1.bf16.msra.mxu0 %v1556
          %1580 = vmatprep.subr.bf16.mxu0 0
          %1581 = vmatpush1.bf16.msra.mxu0 %v1557
          %1582 = vmatprep.subr.bf16.mxu0 0
          %1583 = vmatpush1.bf16.msra.mxu0 0
          %1584 = vmatprep.subr.bf16.mxu0 0
          %1585 = vmatpush1.bf16.msra.mxu0 0
          %1586 = vmatprep.subr.bf16.mxu0 0
          %1587 = vmatpush1.bf16.msra.mxu0 0
          %1588 = vmatprep.subr.bf16.mxu0 0
          %1589 = vmatpush1.bf16.msra.mxu0 0
          %1590 = vmatprep.subr.bf16.mxu0 0
          %1591 = vmatpush1.bf16.msra.mxu0 0
          %1592 = vmatprep.subr.bf16.mxu0 0
          %1593 = vmatpush1.bf16.msra.mxu0 0
          %1594 = vmatprep.subr.bf16.mxu0 0
          %1595 = vmatpush1.bf16.msra.mxu0 0
          %1596 = vmatprep.subr.bf16.mxu0 0
          %1597 = vmatpush1.bf16.msra.mxu0 0
          %1598 = vmatprep.mubr.bf16.mxu0 0
          %1599 = vmatmul.mubr.bf16.gmra.mrb[0].mxu0 %v1494
          %v1600 = vpop.f32.mrb[0].mxu0
          %v1601 = vadd.f32 %v1516, %v1600
          %v1602 = vpop.f32.mrb[0].mxu0
          %v1603 = vpop.f32.mrb[0].mxu0
          %v1604 = vpop.f32.mrb[0].mxu0
          %1605 = vdwg.mxu0
          %1606 = vst [vmem:[#allocation15] sm:$0xff] %v1601
        $region108: #{tpu_custom_call.1} parent=59 // pred_fallthru
          _
        // Predicated region
        $region109: #{tpu_custom_call.1} parent=59 // pred_check
          %p1607 = pneg %p315
        $region110: #{tpu_custom_call.1} parent=59 // pred_check_branch
          %1609 = sbr.rel (%p1607) target = $region112
        $region111: #{tpu_custom_call.1} parent=59 // pred_region
          %s1611 = ssub.s32 128, 128
          %1612 = vsyncadd [#allocation7], %s1611
          %s1614 = sshll.u32 [#allocation15], 4
          %s1615 = int_to_ptr.vmem [resolvable:$true] %s1614
          %1617 = dma.vmem_to_hbm [thread:$0]  %s1615, 128, %s10, [#allocation7]
        $region112: #{tpu_custom_call.1} parent=59 // pred_fallthru
          _
        // Predicated region
        $region113: #{tpu_custom_call.1} parent=59 // pred_check
          %p1618 = pneg %p315
        $region114: #{tpu_custom_call.1} parent=59 // pred_check_branch
          %1620 = sbr.rel (%p1618) target = $region116
        $region115: #{tpu_custom_call.1} parent=59 // pred_region
          %1621 = dma.done [#allocation7], 128
        $region116: #{tpu_custom_call.1} parent=59 // pred_fallthru
          _
      $region60: #{tpu_custom_call.1} parent=5 // pred_fallthru
        _
      %p1622 = scmp.le.s32.totalorder 2, %s22
      // Predicated region
      $region117: #{tpu_custom_call.1} parent=5 // pred_check
        %p1623 = pneg %p1622
      $region118: #{tpu_custom_call.1} parent=5 // pred_check_branch
        %1625 = sbr.rel (%p1623) target = $region120
      $region119: #{tpu_custom_call.1} parent=5 // pred_region
        %s1626 = ssub.s32 %s22, 2
      $region120: #{tpu_custom_call.1} parent=5 // pred_fallthru
        _
    $region6: #{tpu_custom_call.1} parent=1 // loop_footer
      %s26 = sadd.s32 1, %s22
    $region7: #{tpu_custom_call.1} parent=1 // loop_footer_branch
      %21 = sbr.rel target = $region3
    $region8: #{tpu_custom_call.1} parent=1 // loop_exit
      _
    %1627 = vsyncpa [#allocation6], 1
    %s1628 = scalar_lea.sflag [#allocation6], 1
    %1629 = vsyncpa %s1628, 1
    %1630 = vsyncpa [#allocation9], 1
    %1631 = vsyncpa [#allocation14], 1
    %1632 = vsyncpa [#allocation7], 1
    %s1633 = scalar_lea.sflag [#allocation7], 1
    %1634 = vsyncpa %s1633, 1

</llo_original>
